<compile_context>
chip_gen: v7x
topology: tpu7x:2x2x1
jax: 0.10.0
libtpu: 0.0.40
codegen_flags: <defaults>
</compile_context>

<pallas_src>
import functools

import jax
import jax.numpy as jnp
from jax import lax
from jax.experimental import pallas as pl
from jax.experimental.pallas import tpu as pltpu

EPS = 1e-5                       # nn.InstanceNorm2d default
VMEM_LIMIT = 48 * 1024 * 1024    # v7x-safe (64 MiB physical); can be raised on v5e/v6e


# ------------------------------ kernel helpers -----------------------------------
def _assemble_pad(pad_ref, xt, xm, xb, TH, W, transform):
    """Assemble the (TH+2, W+2, C) reflect-padded tile in pad_ref.

    Interior columns 1..W come from the tile (halo rows above/below fetched via
    scalar-prefetched row indices); the two W pad columns are reflections of
    interior columns 1 and W-2 (written from pad_ref itself, so no W-padded
    copy ever hits HBM).  `transform` is the pointwise op applied while
    assembling (dtype cast, or IN-affine + ReLU for the second conv); pointwise
    ops commute with reflection padding.
    """
    pad_ref[0, 1:W + 1, :] = transform(xt)
    pad_ref[1:TH + 1, 1:W + 1, :] = transform(xm)
    pad_ref[TH + 1, 1:W + 1, :] = transform(xb)
    pad_ref[:, 0, :] = pad_ref[:, 2, :]           # reflect left  (interior col 1)
    pad_ref[:, W + 1, :] = pad_ref[:, W - 1, :]   # reflect right (interior col W-2)


def _build_cols(col_ref, pad_ref, TH, W, C):
    """Build the im2col slab ONCE per tile:
       col[r*W + w, dw*C:(dw+1)*C] = pad[r, w+dw, :].
    Each kernel-row matmul then reads a contiguous dim-0 slice of col_ref."""
    R = TH + 2
    for dw in range(3):
        col_ref[:, dw * C:(dw + 1) * C] = pad_ref[:, dw:dw + W, :].reshape(R * W, C)


def _conv_tile(col_ref, w_ref, b_ref, TH, W, C):
    """3x3 'valid' conv = 3 MXU matmuls over contiguous slices of the im2col
    slab (K folded to 3*C).  f32 accumulation; no zero-init (dh=0 writes the
    accumulator directly).  Returns (TH*W, C) f32."""
    M = TH * W
    acc = jnp.dot(col_ref[0:M, :], w_ref[0], preferred_element_type=jnp.float32)
    acc = acc + jnp.dot(col_ref[W:W + M, :], w_ref[1],
                        preferred_element_type=jnp.float32)
    acc = acc + jnp.dot(col_ref[2 * W:2 * W + M, :], w_ref[2],
                        preferred_element_type=jnp.float32)
    return acc + b_ref[...].astype(jnp.float32)           # (M, C) + (1, C)


def _accumulate_stats(st_ref, y, i):
    """Fused conv epilogue: per-channel sum / sum-of-squares, accumulated over
    the inner ('arbitrary') H-tile axis into a resident (1, 1, 2, C) block."""
    s = jnp.sum(y, axis=0, keepdims=True)                  # (1, C)
    ss = jnp.sum(y * y, axis=0, keepdims=True)             # (1, C)
    st = jnp.concatenate([s, ss], axis=0)                  # (2, C)

    @pl.when(i == 0)
    def _init():
        st_ref[0, 0] = st

    @pl.when(i > 0)
    def _acc():
        st_ref[0, 0] = st_ref[0, 0] + st


# ------------------------------ kernel bodies ------------------------------------
def _conv_stats_body(tr_ref, br_ref, xm_ref, xt_ref, xb_ref, w_ref, b_ref,
                     y_ref, st_ref, pad_ref, col_ref, *, TH, W, C):
    """Kernel A: in-kernel reflect-pad + conv1 + fused stats."""
    i = pl.program_id(2)
    cd = pad_ref.dtype
    _assemble_pad(pad_ref, xt_ref[0, 0], xm_ref[0], xb_ref[0, 0], TH, W,
                  lambda v: v.astype(cd))
    _build_cols(col_ref, pad_ref, TH, W, C)
    y = _conv_tile(col_ref, w_ref, b_ref, TH, W, C)        # (TH*W, C) f32
    yq = y.astype(y_ref.dtype)                             # stats match stored value
    _accumulate_stats(st_ref, yq.astype(jnp.float32), i)
    y_ref[0] = yq.reshape(TH, W, C)


def _in_relu_conv_stats_body(tr_ref, br_ref, xm_ref, xt_ref, xb_ref,
                             sc_ref, of_ref, w_ref, b_ref,
                             y_ref, st_ref, pad_ref, col_ref, *, TH, W, C):
    """Kernel B: IN1 (precomputed per-channel affine) + ReLU fused into the
    padded-tile assembly, then reflect-pad + conv2 + fused stats."""
    i = pl.program_id(2)
    cd = pad_ref.dtype
    sc = sc_ref[0]                                         # (1, C) f32
    of = of_ref[0]

    def nr(v):                                             # pointwise IN + ReLU
        return jnp.maximum(v.astype(jnp.float32) * sc + of, 0.0).astype(cd)

    _assemble_pad(pad_ref, xt_ref[0, 0], xm_ref[0], xb_ref[0, 0], TH, W, nr)
    # TODO(synk): use_dropout=False in ResBlkPIFuNet config; nn.Dropout(0.5) omitted.
    _build_cols(col_ref, pad_ref, TH, W, C)
    y = _conv_tile(col_ref, w_ref, b_ref, TH, W, C)
    yq = y.astype(y_ref.dtype)
    _accumulate_stats(st_ref, yq.astype(jnp.float32), i)
    y_ref[0] = yq.reshape(TH, W, C)


def _in_residual_body(x_ref, y_ref, sc_ref, of_ref, o_ref):
    """Kernel C: out = x + IN2(conv2), with IN2 as a precomputed affine (f32)."""
    y = y_ref[0].astype(jnp.float32)
    o_ref[0] = x_ref[0] + (y * sc_ref[0] + of_ref[0])


# --------------------------------- wrapper ---------------------------------------
def _pick_tile_h(H, W, C, tile_h, itemsize, target_bytes=4 << 20):
    """Largest divisor of H whose compute-dtype padded tile fits the per-buffer
    VMEM target (bf16 compute_dtype doubles TH vs f32 at the same budget)."""
    # TODO(synk): masked last-tile stats for non-divisor H would keep TH near the
    # VMEM-optimal size for awkward H instead of falling back to a small divisor.
    if tile_h is not None:
        if H % tile_h != 0:
            raise ValueError("tile_h must divide H")
        return tile_h
    row_bytes = (W + 2) * C * itemsize
    for th in range(H, 0, -1):
        if H % th == 0 and th * row_bytes <= target_bytes:
            return th
    return 1


def _scale_offset(stats, n_px):
    """InstanceNorm per-(sample, channel) scale/offset from (sum, sum_sq) f32."""
    mean = stats[:, 0, :] / n_px
    var = jnp.maximum(stats[:, 1, :] / n_px - mean * mean, 0.0)
    scale = lax.rsqrt(var + EPS)
    return scale[:, None, :], (-mean * scale)[:, None, :]       # (B, 1, C) each


def resnet_block(x_nchw, w1, b1, w2, b2, *, tile_h=None,
                 compute_dtype=jnp.bfloat16):
    """x_nchw: (B, C, H, W) f32.  Weights HWIO (3,3,C,C); biases (C,)."""
    B, C, H, W = x_nchw.shape
    itemsize = jnp.dtype(compute_dtype).itemsize
    TH = _pick_tile_h(H, W, C, tile_h, itemsize)
    NT = H // TH
    NC = 2 if NT % 2 == 0 else 1         # 2nd parallel axis -> both v7x TCs at B=1
    NTC = NT // NC
    n_px = float(H * W)

    # NHWC, f32 (residual source; also conv1 input -- cast to compute_dtype in-kernel).
    x = jnp.transpose(x_nchw, (0, 2, 3, 1)).astype(jnp.float32)

    # Weight slabs: (3,3,Cin,Cout) -> (3, 3*Cin, Cout); row dh stacks
    # [w[dh,0]; w[dh,1]; w[dh,2]] along K, matching the im2col lane order.
    w1s = w1.reshape(3, 3 * C, C).astype(compute_dtype)
    w2s = w2.reshape(3, 3 * C, C).astype(compute_dtype)
    b1r = b1.reshape(1, C).astype(jnp.float32)
    b2r = b2.reshape(1, C).astype(jnp.float32)

    # Scalar-prefetched halo row indices per H-tile (reflect at image top/bottom).
    idx = jnp.arange(NT, dtype=jnp.int32)
    top_rows = jnp.where(idx == 0, 1, idx * TH - 1).astype(jnp.int32)
    bot_rows = jnp.where(idx == NT - 1, H - 2, idx * TH + TH).astype(jnp.int32)

    conv_params = pltpu.CompilerParams(
        dimension_semantics=("parallel", "parallel", "arbitrary"),
        vmem_limit_bytes=VMEM_LIMIT)

    def conv_specs(with_norm):
        def t(c, i):                       # global H-tile index
            return c * NTC + i
        in_specs = [
            pl.BlockSpec((1, TH, W, C), lambda b, c, i, tr, br: (b, t(c, i), 0, 0)),
            pl.BlockSpec((1, 1, W, C), lambda b, c, i, tr, br: (b, tr[t(c, i)], 0, 0)),
            pl.BlockSpec((1, 1, W, C), lambda b, c, i, tr, br: (b, br[t(c, i)], 0, 0)),
        ]
        if with_norm:
            in_specs += [
                pl.BlockSpec((1, 1, C), lambda b, c, i, tr, br: (b, 0, 0)),
                pl.BlockSpec((1, 1, C), lambda b, c, i, tr, br: (b, 0, 0)),
            ]
        in_specs += [
            pl.BlockSpec((3, 3 * C, C), lambda b, c, i, tr, br: (0, 0, 0)),  # resident
            pl.BlockSpec((1, C), lambda b, c, i, tr, br: (0, 0)),
        ]
        out_specs = (
            pl.BlockSpec((1, TH, W, C), lambda b, c, i, tr, br: (b, t(c, i), 0, 0)),
            pl.BlockSpec((1, 1, 2, C), lambda b, c, i, tr, br: (b, c, 0, 0)),  # accum.
        )
        return in_specs, out_specs

    scratch = [pltpu.VMEM((TH + 2, W + 2, C), compute_dtype),      # padded tile
               pltpu.VMEM(((TH + 2) * W, 3 * C), compute_dtype)]   # im2col slab

    # ---- kernel A: reflect-pad + conv1 + stats1 ------------------------------
    in_specs, out_specs = conv_specs(with_norm=False)
    y1, stats1 = pl.pallas_call(
        functools.partial(_conv_stats_body, TH=TH, W=W, C=C),
        out_shape=(jax.ShapeDtypeStruct((B, H, W, C), compute_dtype),
                   jax.ShapeDtypeStruct((B, NC, 2, C), jnp.float32)),
        grid_spec=pltpu.PrefetchScalarGridSpec(
            num_scalar_prefetch=2, grid=(B, NC, NTC),
            in_specs=in_specs, out_specs=out_specs, scratch_shapes=scratch),
        compiler_params=conv_params,
    )(top_rows, bot_rows, x, x, x, w1s, b1r)

    sc1, of1 = _scale_offset(jnp.sum(stats1, axis=1), n_px)

    # ---- kernel B: IN1 + ReLU + reflect-pad + conv2 + stats2 -----------------
    in_specs, out_specs = conv_specs(with_norm=True)
    y2, stats2 = pl.pallas_call(
        functools.partial(_in_relu_conv_stats_body, TH=TH, W=W, C=C),
        out_shape=(jax.ShapeDtypeStruct((B, H, W, C), compute_dtype),
                   jax.ShapeDtypeStruct((B, NC, 2, C), jnp.float32)),
        grid_spec=pltpu.PrefetchScalarGridSpec(
            num_scalar_prefetch=2, grid=(B, NC, NTC),
            in_specs=in_specs, out_specs=out_specs, scratch_shapes=scratch),
        compiler_params=conv_params,
    )(top_rows, bot_rows, y1, y1, y1, sc1, of1, w2s, b2r)

    sc2, of2 = _scale_offset(jnp.sum(stats2, axis=1), n_px)

    # ---- kernel C: IN2 + residual add (fully parallel, elementwise) ----------
    out = pl.pallas_call(
        _in_residual_body,
        out_shape=jax.ShapeDtypeStruct((B, H, W, C), jnp.float32),
        grid_spec=pltpu.PrefetchScalarGridSpec(
            num_scalar_prefetch=0, grid=(B, NT),
            in_specs=[
                pl.BlockSpec((1, TH, W, C), lambda b, i: (b, i, 0, 0)),
                pl.BlockSpec((1, TH, W, C), lambda b, i: (b, i, 0, 0)),
                pl.BlockSpec((1, 1, C), lambda b, i: (b, 0, 0)),
                pl.BlockSpec((1, 1, C), lambda b, i: (b, 0, 0)),
            ],
            out_specs=pl.BlockSpec((1, TH, W, C), lambda b, i: (b, i, 0, 0))),
        compiler_params=pltpu.CompilerParams(
            dimension_semantics=("parallel", "parallel"),
            vmem_limit_bytes=VMEM_LIMIT),
    )(x, y2, sc2, of2)

    return jnp.transpose(out, (0, 3, 1, 2))                # -> NCHW


# ----------------------- pure-JAX reference (for verification) -------------------
def _ref_block(x_nchw, w1, b1, w2, b2):
    x = jnp.transpose(x_nchw, (0, 2, 3, 1))                # NHWC
    dn = lax.conv_dimension_numbers(x.shape, w1.shape, ("NHWC", "HWIO", "NHWC"))

    def conv(t, w, b):
        tp = jnp.pad(t, ((0, 0), (1, 1), (1, 1), (0, 0)), mode="reflect")
        y = lax.conv_general_dilated(tp, w, (1, 1), "VALID", dimension_numbers=dn)
        return y + b

    def inorm(t):
        m = jnp.mean(t, axis=(1, 2), keepdims=True)
        v = jnp.mean((t - m) ** 2, axis=(1, 2), keepdims=True)
        return (t - m) * lax.rsqrt(v + EPS)

    y = jnp.maximum(inorm(conv(x, w1, b1)), 0.0)
    y = inorm(conv(y, w2, b2))
    return jnp.transpose(x + y, (0, 3, 1, 2))


if __name__ == "__main__":
    B, C, H, W = 2, 4, 16, 16
    key = jax.random.PRNGKey(0)
    kx, k1, k2, k3, k4 = jax.random.split(key, 5)

    x = jax.random.normal(kx, (B, C, H, W), jnp.float32)
    # Conv2d(dim, dim, kernel_size=3, bias=True) parameters (synthetic, HWIO).
    w1 = 0.1 * jax.random.normal(k1, (3, 3, C, C), jnp.float32)
    b1 = 0.1 * jax.random.normal(k2, (C,), jnp.float32)
    w2 = 0.1 * jax.random.normal(k3, (3, 3, C, C), jnp.float32)
    b2 = 0.1 * jax.random.normal(k4, (C,), jnp.float32)

    ref = jax.block_until_ready(_ref_block(x, w1, b1, w2, b2))

    # f32 path; tile_h=4 -> 4 H-tiles/image split over NC=2 halves, exercising
    # the halo fetch, the in-kernel W reflect-pad, the megacore split axis, and
    # the cross-tile InstanceNorm accumulation.
    out = jax.block_until_ready(
        resnet_block(x, w1, b1, w2, b2, tile_h=4, compute_dtype=jnp.float32))
    assert out.shape == (B, C, H, W)
    assert jnp.allclose(out, ref, atol=1e-4, rtol=1e-4), "f32 mismatch vs reference"

    # Default bf16 path (bf16 matmul operands, scratch, HBM intermediates; f32
    # stats/accumulation/residual); looser tolerance for bf16 quantization.
    out_bf16 = jax.block_until_ready(
        resnet_block(x, w1, b1, w2, b2, tile_h=4))
    assert jnp.allclose(out_bf16, ref, atol=1e-1, rtol=5e-2), "bf16 mismatch vs reference"

    print("KERNEL_OK")
</pallas_src>

<mosaic_0001>
module attributes {stable_mosaic.version = 11 : i64} {
  func.func @_conv_stats_body(%arg0: i32, %arg1: i32, %arg2: i32, %arg3: memref<4xi32, #tpu.memory_space<smem>>, %arg4: memref<4xi32, #tpu.memory_space<smem>>, %arg5: memref<1x4x16x4xf32, #tpu.memory_space<vmem>>, %arg6: memref<1x1x16x4xf32, #tpu.memory_space<vmem>>, %arg7: memref<1x1x16x4xf32, #tpu.memory_space<vmem>>, %arg8: memref<3x12x4xf32, #tpu.memory_space<vmem>>, %arg9: memref<1x4xf32, #tpu.memory_space<vmem>>, %arg10: memref<1x4x16x4xf32, #tpu.memory_space<vmem>>, %arg11: memref<1x1x2x4xf32, #tpu.memory_space<vmem>>, %arg12: memref<6x18x4xf32, #tpu.memory_space<vmem>>, %arg13: memref<96x12xf32, #tpu.memory_space<vmem>>) attributes {dimension_semantics = [#tpu.dimension_semantics<parallel>, #tpu.dimension_semantics<parallel>, #tpu.dimension_semantics<arbitrary>], iteration_bounds = array<i64: 2, 2, 2>, scalar_prefetch = 2 : i64, scratch_operands = 2 : i64, tpu.core_type = #tpu.core_type<tc>, window_params = [{transform_indices = @transform_0, window_bounds = array<i64: 1, 4, 16, 4>}, {transform_indices = @transform_1, window_bounds = array<i64: 1, 1, 16, 4>}, {transform_indices = @transform_2, window_bounds = array<i64: 1, 1, 16, 4>}, {pipeline_mode = #tpu.pipeline_mode<synchronous>, transform_indices = @transform_3, window_bounds = array<i64: 3, 12, 4>}, {pipeline_mode = #tpu.pipeline_mode<synchronous>, transform_indices = @transform_4, window_bounds = array<i64: 1, 4>}, {transform_indices = @transform_5, window_bounds = array<i64: 1, 4, 16, 4>}, {transform_indices = @transform_6, window_bounds = array<i64: 1, 1, 2, 4>}]} {
    %c0 = arith.constant 0 : index
    %c0_0 = arith.constant 0 : index
    %c0_1 = arith.constant 0 : index
    %c0_2 = arith.constant 0 : index
    %0 = vector.load %arg6[%c0, %c0_0, %c0_1, %c0_2] : memref<1x1x16x4xf32, #tpu.memory_space<vmem>>, vector<1x1x16x4xf32>
    %1 = vector.shape_cast %0 : vector<1x1x16x4xf32> to vector<16x4xf32>
    %c0_3 = arith.constant 0 : index
    %c0_4 = arith.constant 0 : index
    %c0_5 = arith.constant 0 : index
    %c0_6 = arith.constant 0 : index
    %2 = vector.load %arg5[%c0_3, %c0_4, %c0_5, %c0_6] : memref<1x4x16x4xf32, #tpu.memory_space<vmem>>, vector<1x4x16x4xf32>
    %3 = vector.shape_cast %2 : vector<1x4x16x4xf32> to vector<4x16x4xf32>
    %c0_7 = arith.constant 0 : index
    %c0_8 = arith.constant 0 : index
    %c0_9 = arith.constant 0 : index
    %c0_10 = arith.constant 0 : index
    %4 = vector.load %arg7[%c0_7, %c0_8, %c0_9, %c0_10] : memref<1x1x16x4xf32, #tpu.memory_space<vmem>>, vector<1x1x16x4xf32>
    %5 = vector.shape_cast %4 : vector<1x1x16x4xf32> to vector<16x4xf32>
    %c0_11 = arith.constant 0 : index
    %c1 = arith.constant 1 : index
    %c0_12 = arith.constant 0 : index
    %6 = vector.load %arg12[%c0_11, %c1, %c0_12] : memref<6x18x4xf32, #tpu.memory_space<vmem>>, vector<1x16x4xf32>
    %7 = vector.shape_cast %6 : vector<1x16x4xf32> to vector<16x4xf32>
    %8 = vector.shape_cast %1 : vector<16x4xf32> to vector<1x16x4xf32>
    tpu.vector_store %arg12[%c0_11, %c1, %c0_12], %8 {strides = array<i32>} : memref<6x18x4xf32, #tpu.memory_space<vmem>>, vector<1x16x4xf32>,
    %c1_13 = arith.constant 1 : index
    %c1_14 = arith.constant 1 : index
    %c0_15 = arith.constant 0 : index
    %9 = vector.load %arg12[%c1_13, %c1_14, %c0_15] : memref<6x18x4xf32, #tpu.memory_space<vmem>>, vector<4x16x4xf32>
    tpu.vector_store %arg12[%c1_13, %c1_14, %c0_15], %3 {strides = array<i32>} : memref<6x18x4xf32, #tpu.memory_space<vmem>>, vector<4x16x4xf32>,
    %c5 = arith.constant 5 : index
    %c1_16 = arith.constant 1 : index
    %c0_17 = arith.constant 0 : index
    %10 = vector.load %arg12[%c5, %c1_16, %c0_17] : memref<6x18x4xf32, #tpu.memory_space<vmem>>, vector<1x16x4xf32>
    %11 = vector.shape_cast %10 : vector<1x16x4xf32> to vector<16x4xf32>
    %12 = vector.shape_cast %5 : vector<16x4xf32> to vector<1x16x4xf32>
    tpu.vector_store %arg12[%c5, %c1_16, %c0_17], %12 {strides = array<i32>} : memref<6x18x4xf32, #tpu.memory_space<vmem>>, vector<1x16x4xf32>,
    %c0_18 = arith.constant 0 : index
    %c2 = arith.constant 2 : index
    %c0_19 = arith.constant 0 : index
    %13 = vector.load %arg12[%c0_18, %c2, %c0_19] : memref<6x18x4xf32, #tpu.memory_space<vmem>>, vector<6x1x4xf32>
    %14 = vector.shape_cast %13 : vector<6x1x4xf32> to vector<6x4xf32>
    %c0_20 = arith.constant 0 : index
    %c0_21 = arith.constant 0 : index
    %c0_22 = arith.constant 0 : index
    %15 = vector.load %arg12[%c0_20, %c0_21, %c0_22] : memref<6x18x4xf32, #tpu.memory_space<vmem>>, vector<6x1x4xf32>
    %16 = vector.shape_cast %15 : vector<6x1x4xf32> to vector<6x4xf32>
    %17 = vector.shape_cast %14 : vector<6x4xf32> to vector<6x1x4xf32>
    tpu.vector_store %arg12[%c0_20, %c0_21, %c0_22], %17 {strides = array<i32>} : memref<6x18x4xf32, #tpu.memory_space<vmem>>, vector<6x1x4xf32>,
    %c0_23 = arith.constant 0 : index
    %c15 = arith.constant 15 : index
    %c0_24 = arith.constant 0 : index
    %18 = vector.load %arg12[%c0_23, %c15, %c0_24] : memref<6x18x4xf32, #tpu.memory_space<vmem>>, vector<6x1x4xf32>
    %19 = vector.shape_cast %18 : vector<6x1x4xf32> to vector<6x4xf32>
    %c0_25 = arith.constant 0 : index
    %c17 = arith.constant 17 : index
    %c0_26 = arith.constant 0 : index
    %20 = vector.load %arg12[%c0_25, %c17, %c0_26] : memref<6x18x4xf32, #tpu.memory_space<vmem>>, vector<6x1x4xf32>
    %21 = vector.shape_cast %20 : vector<6x1x4xf32> to vector<6x4xf32>
    %22 = vector.shape_cast %19 : vector<6x4xf32> to vector<6x1x4xf32>
    tpu.vector_store %arg12[%c0_25, %c17, %c0_26], %22 {strides = array<i32>} : memref<6x18x4xf32, #tpu.memory_space<vmem>>, vector<6x1x4xf32>,
    %c0_27 = arith.constant 0 : index
    %c0_28 = arith.constant 0 : index
    %c0_29 = arith.constant 0 : index
    %23 = vector.load %arg12[%c0_27, %c0_28, %c0_29] : memref<6x18x4xf32, #tpu.memory_space<vmem>>, vector<6x16x4xf32>
    %24 = vector.shape_cast %23 : vector<6x16x4xf32> to vector<96x4xf32>
    %c0_30 = arith.constant 0 : index
    %c0_31 = arith.constant 0 : index
    %25 = vector.load %arg13[%c0_30, %c0_31] : memref<96x12xf32, #tpu.memory_space<vmem>>, vector<96x4xf32>
    tpu.vector_store %arg13[%c0_30, %c0_31], %24 {strides = array<i32>} : memref<96x12xf32, #tpu.memory_space<vmem>>, vector<96x4xf32>,
    %c0_32 = arith.constant 0 : index
    %c1_33 = arith.constant 1 : index
    %c0_34 = arith.constant 0 : index
    %26 = vector.load %arg12[%c0_32, %c1_33, %c0_34] : memref<6x18x4xf32, #tpu.memory_space<vmem>>, vector<6x16x4xf32>
    %27 = vector.shape_cast %26 : vector<6x16x4xf32> to vector<96x4xf32>
    %c0_35 = arith.constant 0 : index
    %c4 = arith.constant 4 : index
    %28 = vector.load %arg13[%c0_35, %c4] : memref<96x12xf32, #tpu.memory_space<vmem>>, vector<96x4xf32>
    tpu.vector_store %arg13[%c0_35, %c4], %27 {strides = array<i32>} : memref<96x12xf32, #tpu.memory_space<vmem>>, vector<96x4xf32>,
    %c0_36 = arith.constant 0 : index
    %c2_37 = arith.constant 2 : index
    %c0_38 = arith.constant 0 : index
    %29 = vector.load %arg12[%c0_36, %c2_37, %c0_38] : memref<6x18x4xf32, #tpu.memory_space<vmem>>, vector<6x16x4xf32>
    %30 = vector.shape_cast %29 : vector<6x16x4xf32> to vector<96x4xf32>
    %c0_39 = arith.constant 0 : index
    %c8 = arith.constant 8 : index
    %31 = vector.load %arg13[%c0_39, %c8] : memref<96x12xf32, #tpu.memory_space<vmem>>, vector<96x4xf32>
    tpu.vector_store %arg13[%c0_39, %c8], %30 {strides = array<i32>} : memref<96x12xf32, #tpu.memory_space<vmem>>, vector<96x4xf32>,
    %c0_40 = arith.constant 0 : index
    %c0_41 = arith.constant 0 : index
    %32 = vector.load %arg13[%c0_40, %c0_41] : memref<96x12xf32, #tpu.memory_space<vmem>>, vector<64x12xf32>
    %c0_42 = arith.constant 0 : index
    %c0_43 = arith.constant 0 : index
    %c0_44 = arith.constant 0 : index
    %33 = vector.load %arg8[%c0_42, %c0_43, %c0_44] : memref<3x12x4xf32, #tpu.memory_space<vmem>>, vector<1x12x4xf32>
    %34 = vector.shape_cast %33 : vector<1x12x4xf32> to vector<12x4xf32>
    %cst = arith.constant dense<0.000000e+00> : vector<64x4xf32>
    %35 = tpu.matmul %32, %34, %cst {dimension_numbers = #tpu.dot_dimension_numbers<[1], [0], [0], [1], [0, 0, 1, 1], [], []>} : vector<64x12xf32>, vector<12x4xf32>, vector<64x4xf32> -> vector<64x4xf32>
    %c16 = arith.constant 16 : index
    %c0_45 = arith.constant 0 : index
    %36 = vector.load %arg13[%c16, %c0_45] : memref<96x12xf32, #tpu.memory_space<vmem>>, vector<64x12xf32>
    %c1_46 = arith.constant 1 : index
    %c0_47 = arith.constant 0 : index
    %c0_48 = arith.constant 0 : index
    %37 = vector.load %arg8[%c1_46, %c0_47, %c0_48] : memref<3x12x4xf32, #tpu.memory_space<vmem>>, vector<1x12x4xf32>
    %38 = vector.shape_cast %37 : vector<1x12x4xf32> to vector<12x4xf32>
    %cst_49 = arith.constant dense<0.000000e+00> : vector<64x4xf32>
    %39 = tpu.matmul %36, %38, %cst_49 {dimension_numbers = #tpu.dot_dimension_numbers<[1], [0], [0], [1], [0, 0, 1, 1], [], []>} : vector<64x12xf32>, vector<12x4xf32>, vector<64x4xf32> -> vector<64x4xf32>
    %40 = arith.addf %35, %39 : vector<64x4xf32>
    %c32 = arith.constant 32 : index
    %c0_50 = arith.constant 0 : index
    %41 = vector.load %arg13[%c32, %c0_50] : memref<96x12xf32, #tpu.memory_space<vmem>>, vector<64x12xf32>
    %c2_51 = arith.constant 2 : index
    %c0_52 = arith.constant 0 : index
    %c0_53 = arith.constant 0 : index
    %42 = vector.load %arg8[%c2_51, %c0_52, %c0_53] : memref<3x12x4xf32, #tpu.memory_space<vmem>>, vector<1x12x4xf32>
    %43 = vector.shape_cast %42 : vector<1x12x4xf32> to vector<12x4xf32>
    %cst_54 = arith.constant dense<0.000000e+00> : vector<64x4xf32>
    %44 = tpu.matmul %41, %43, %cst_54 {dimension_numbers = #tpu.dot_dimension_numbers<[1], [0], [0], [1], [0, 0, 1, 1], [], []>} : vector<64x12xf32>, vector<12x4xf32>, vector<64x4xf32> -> vector<64x4xf32>
    %45 = arith.addf %40, %44 : vector<64x4xf32>
    %c0_55 = arith.constant 0 : index
    %c0_56 = arith.constant 0 : index
    %46 = vector.load %arg9[%c0_55, %c0_56] : memref<1x4xf32, #tpu.memory_space<vmem>>, vector<1x4xf32>
    %47 = vector.broadcast %46 : vector<1x4xf32> to vector<64x4xf32>
    %48 = arith.addf %45, %47 : vector<64x4xf32>
    %cst_57 = arith.constant dense<0.000000e+00> : vector<4xf32>
    %49 = vector.multi_reduction <add>, %48, %cst_57 [0] : vector<64x4xf32> to vector<4xf32>
    %50 = vector.shape_cast %49 : vector<4xf32> to vector<1x4xf32>
    %51 = arith.mulf %48, %48 : vector<64x4xf32>
    %cst_58 = arith.constant dense<0.000000e+00> : vector<4xf32>
    %52 = vector.multi_reduction <add>, %51, %cst_58 [0] : vector<64x4xf32> to vector<4xf32>
    %53 = vector.shape_cast %52 : vector<4xf32> to vector<1x4xf32>
    %54 = tpu.concatenate %50, %53 in 0 : vector<1x4xf32>, vector<1x4xf32> -> vector<2x4xf32>
    %c0_i32 = arith.constant 0 : i32
    %55 = arith.cmpi eq, %arg2, %c0_i32 : i32
    %56 = arith.extui %55 : i1 to i32
    %c0_i32_59 = arith.constant 0 : i32
    %57 = arith.cmpi ne, %56, %c0_i32_59 : i32
    scf.if %57 {
      %c0_66 = arith.constant 0 : index
      %c0_67 = arith.constant 0 : index
      %c0_68 = arith.constant 0 : index
      %c0_69 = arith.constant 0 : index
      %65 = vector.load %arg11[%c0_66, %c0_67, %c0_68, %c0_69] : memref<1x1x2x4xf32, #tpu.memory_space<vmem>>, vector<1x1x2x4xf32>
      %66 = vector.shape_cast %65 : vector<1x1x2x4xf32> to vector<2x4xf32>
      %67 = vector.shape_cast %54 : vector<2x4xf32> to vector<1x1x2x4xf32>
      tpu.vector_store %arg11[%c0_66, %c0_67, %c0_68, %c0_69], %67 {strides = array<i32>} : memref<1x1x2x4xf32, #tpu.memory_space<vmem>>, vector<1x1x2x4xf32>,
    } else {
    }
    %c0_i32_60 = arith.constant 0 : i32
    %58 = arith.cmpi sgt, %arg2, %c0_i32_60 : i32
    %59 = arith.extui %58 : i1 to i32
    %c0_i32_61 = arith.constant 0 : i32
    %60 = arith.cmpi ne, %59, %c0_i32_61 : i32
    scf.if %60 {
      %c0_66 = arith.constant 0 : index
      %c0_67 = arith.constant 0 : index
      %c0_68 = arith.constant 0 : index
      %c0_69 = arith.constant 0 : index
      %65 = vector.load %arg11[%c0_66, %c0_67, %c0_68, %c0_69] : memref<1x1x2x4xf32, #tpu.memory_space<vmem>>, vector<1x1x2x4xf32>
      %66 = vector.shape_cast %65 : vector<1x1x2x4xf32> to vector<2x4xf32>
      %67 = arith.addf %66, %54 : vector<2x4xf32>
      %c0_70 = arith.constant 0 : index
      %c0_71 = arith.constant 0 : index
      %c0_72 = arith.constant 0 : index
      %c0_73 = arith.constant 0 : index
      %68 = vector.load %arg11[%c0_70, %c0_71, %c0_72, %c0_73] : memref<1x1x2x4xf32, #tpu.memory_space<vmem>>, vector<1x1x2x4xf32>
      %69 = vector.shape_cast %68 : vector<1x1x2x4xf32> to vector<2x4xf32>
      %70 = vector.shape_cast %67 : vector<2x4xf32> to vector<1x1x2x4xf32>
      tpu.vector_store %arg11[%c0_70, %c0_71, %c0_72, %c0_73], %70 {strides = array<i32>} : memref<1x1x2x4xf32, #tpu.memory_space<vmem>>, vector<1x1x2x4xf32>,
    } else {
    }
    %61 = vector.shape_cast %48 : vector<64x4xf32> to vector<4x16x4xf32>
    %c0_62 = arith.constant 0 : index
    %c0_63 = arith.constant 0 : index
    %c0_64 = arith.constant 0 : index
    %c0_65 = arith.constant 0 : index
    %62 = vector.load %arg10[%c0_62, %c0_63, %c0_64, %c0_65] : memref<1x4x16x4xf32, #tpu.memory_space<vmem>>, vector<1x4x16x4xf32>
    %63 = vector.shape_cast %62 : vector<1x4x16x4xf32> to vector<4x16x4xf32>
    %64 = vector.shape_cast %61 : vector<4x16x4xf32> to vector<1x4x16x4xf32>
    tpu.vector_store %arg10[%c0_62, %c0_63, %c0_64, %c0_65], %64 {strides = array<i32>} : memref<1x4x16x4xf32, #tpu.memory_space<vmem>>, vector<1x4x16x4xf32>,
    return
  }
  func.func @transform_0(%arg0: i32, %arg1: i32, %arg2: i32, %arg3: memref<4xi32, #tpu.memory_space<smem>>, %arg4: memref<4xi32, #tpu.memory_space<smem>>) -> (i32, i32, i32, i32) {
    %c2_i32 = arith.constant 2 : i32
    %0 = arith.muli %arg1, %c2_i32 : i32
    %1 = arith.addi %0, %arg2 : i32
    %c0_i32 = arith.constant 0 : i32
    %c0_i32_0 = arith.constant 0 : i32
    %c0_i32_1 = arith.constant 0 : i32
    return %arg0, %1, %c0_i32, %c0_i32_0 : i32, i32, i32, i32
  }
  func.func @transform_1(%arg0: i32, %arg1: i32, %arg2: i32, %arg3: memref<4xi32, #tpu.memory_space<smem>>, %arg4: memref<4xi32, #tpu.memory_space<smem>>) -> (i32, i32, i32, i32) {
    %c2_i32 = arith.constant 2 : i32
    %0 = arith.muli %arg1, %c2_i32 : i32
    %1 = arith.addi %0, %arg2 : i32
    %2 = arith.index_cast %1 : i32 to index
    %3 = memref.load %arg3[%2] : memref<4xi32, #tpu.memory_space<smem>>
    %c0_i32 = arith.constant 0 : i32
    %c0_i32_0 = arith.constant 0 : i32
    %c0_i32_1 = arith.constant 0 : i32
    return %arg0, %3, %c0_i32, %c0_i32_0 : i32, i32, i32, i32
  }
  func.func @transform_2(%arg0: i32, %arg1: i32, %arg2: i32, %arg3: memref<4xi32, #tpu.memory_space<smem>>, %arg4: memref<4xi32, #tpu.memory_space<smem>>) -> (i32, i32, i32, i32) {
    %c2_i32 = arith.constant 2 : i32
    %0 = arith.muli %arg1, %c2_i32 : i32
    %1 = arith.addi %0, %arg2 : i32
    %2 = arith.index_cast %1 : i32 to index
    %3 = memref.load %arg4[%2] : memref<4xi32, #tpu.memory_space<smem>>
    %c0_i32 = arith.constant 0 : i32
    %c0_i32_0 = arith.constant 0 : i32
    %c0_i32_1 = arith.constant 0 : i32
    return %arg0, %3, %c0_i32, %c0_i32_0 : i32, i32, i32, i32
  }
  func.func @transform_3(%arg0: i32, %arg1: i32, %arg2: i32, %arg3: memref<4xi32, #tpu.memory_space<smem>>, %arg4: memref<4xi32, #tpu.memory_space<smem>>) -> (i32, i32, i32) {
    %c0_i32 = arith.constant 0 : i32
    %c0_i32_0 = arith.constant 0 : i32
    %c0_i32_1 = arith.constant 0 : i32
    %c0_i32_2 = arith.constant 0 : i32
    return %c0_i32, %c0_i32_0, %c0_i32_1 : i32, i32, i32
  }
  func.func @transform_4(%arg0: i32, %arg1: i32, %arg2: i32, %arg3: memref<4xi32, #tpu.memory_space<smem>>, %arg4: memref<4xi32, #tpu.memory_space<smem>>) -> (i32, i32) {
    %c0_i32 = arith.constant 0 : i32
    %c0_i32_0 = arith.constant 0 : i32
    %c0_i32_1 = arith.constant 0 : i32
    return %c0_i32, %c0_i32_0 : i32, i32
  }
  func.func @transform_5(%arg0: i32, %arg1: i32, %arg2: i32, %arg3: memref<4xi32, #tpu.memory_space<smem>>, %arg4: memref<4xi32, #tpu.memory_space<smem>>) -> (i32, i32, i32, i32) {
    %c2_i32 = arith.constant 2 : i32
    %0 = arith.muli %arg1, %c2_i32 : i32
    %1 = arith.addi %0, %arg2 : i32
    %c0_i32 = arith.constant 0 : i32
    %c0_i32_0 = arith.constant 0 : i32
    %c0_i32_1 = arith.constant 0 : i32
    return %arg0, %1, %c0_i32, %c0_i32_0 : i32, i32, i32, i32
  }
  func.func @transform_6(%arg0: i32, %arg1: i32, %arg2: i32, %arg3: memref<4xi32, #tpu.memory_space<smem>>, %arg4: memref<4xi32, #tpu.memory_space<smem>>) -> (i32, i32, i32, i32) {
    %c0_i32 = arith.constant 0 : i32
    %c0_i32_0 = arith.constant 0 : i32
    %c0_i32_1 = arith.constant 0 : i32
    return %arg0, %arg1, %c0_i32, %c0_i32_0 : i32, i32, i32, i32
  }
}

</mosaic_0001>

<llo_original>
// kernel: tpu_custom_call.1
$region0: #{tpu_custom_call.1}
  #allocation0 [shape = 'u32[]', space=smem, size = 0x4, offset = 0x4, fixed_abs, tag = 'smem constant byte address 0x4 - core index']
  #allocation1 [shape = 'u32[144,128]{1,0:T(1,128)}', space=vmem, size = 0x12000, scoped, tag = 'internal scratch']
  #allocation2 [shape = 'f32[6,18,4]{2,1,0:T(8,128)}', space=vmem, size = 0x12000, scoped, tag = 'scratch operand']
  #allocation3 [shape = 'f32[96,12]{1,0:T(8,128)}', space=vmem, size = 0xc000, scoped, tag = 'scratch operand']
  #allocation4 [shape = 's32[1]{0}', space=sflag, size = 0x4, scoped, tag = 'scoped memory for tpu_custom_call.1']
  #allocation5 [shape = 'u8[512]{0}', space=smem, size = 0x200, scoped, tag = 'prefetched SMEM operand 0']
  #allocation6 [shape = 'u8[512]{0}', space=smem, size = 0x200, scoped, tag = 'prefetched SMEM operand 1']
  %s0 = inlined_call_operand.vmem [shape: s32[4], index: 0, kind: input, shape index: {}]
  %s1 = inlined_call_operand.vmem [shape: s32[4], index: 1, kind: input, shape index: {}]
  %s2 = inlined_call_operand.vmem [shape: f32[2,16,16,4], index: 2, kind: input, shape index: {}]
  %s3 = inlined_call_operand.vmem [shape: f32[2,16,16,4], index: 3, kind: input, shape index: {}]
  %s4 = inlined_call_operand.vmem [shape: f32[2,16,16,4], index: 4, kind: input, shape index: {}]
  %s5 = inlined_call_operand.vmem [shape: f32[3,12,4], index: 5, kind: input, shape index: {}]
  %s6 = inlined_call_operand.vmem [shape: f32[1,4], index: 6, kind: input, shape index: {}]
  %s7 = inlined_call_operand.vmem [shape: f32[2,16,16,4], index: 7, kind: output, shape index: {0}]
  %s8 = inlined_call_operand.hbm [shape: f32[2,2,2,4], index: 8, kind: output, shape index: {1}]
  %9 = xla_tuple %s7, %s8
  %s10 = sld [smem:[#allocation0]]
  $region69: #{tpu_custom_call.1} parent=0
    _
  %s12 = ssub.s32 1, %s10
  %s13 = scalar_select 0, %s12, %s10
  %s14 = sshll.u32 %s0, 4
  %s15 = int_to_ptr.vmem [resolvable:$true] %s14
  %17 = dma.vmem_to_smem %s15, 16, [#allocation5], [#allocation4]
  %s18 = sshll.u32 %s1, 4
  %s19 = int_to_ptr.vmem [resolvable:$true] %s18
  %21 = dma.vmem_to_smem %s19, 16, [#allocation6], [#allocation4]
  %22 = dma.done [#allocation4], 32
  %23 = sfence
  $region1: #{tpu_custom_call.1} parent=0
    #allocation7 [shape = 'u8[2048]{0}', space=vmem, size = 0x800, scoped, tag = 'output window, operand 1']
    #allocation8 [shape = 's32[2]{0}', space=sflag, size = 0x8, scoped, tag = 'scoped memory for tpu_custom_call.1']
    %24 = vsyncpa [#allocation8], 0
    %s25 = scalar_lea.sflag [#allocation8], 1
    %26 = vsyncpa %s25, 0
    loop: start=0, step=1, limit=10
    $region2: #{tpu_custom_call.1} parent=1 // loop_pre_header
      _
    $region3: #{tpu_custom_call.1} parent=1 // loop_header
      %s28 = sphi 0, %s32
      %p29 = scmp.ge.s32.totalorder %s28, 10
      %s35 = sphi 0, %s54
      %s36 = sphi 0, %s50
      %s37 = sphi 0, %s46
      %s38 = sphi 0, %s35
      %s39 = sphi 0, %s36
      %s40 = sphi 0, %s37
      %s41 = sphi 0, %s38
      %s42 = sphi 0, %s39
      %s43 = sphi 0, %s40
      %s63 = sphi 0, %s65
      %s66 = sphi 0, %s63
      %s67 = sphi 0, %s66
      %s83 = sphi 0, %s67
      %s97 = sphi 0, %s99
      %s100 = sphi 0, %s97
      %s101 = sphi 0, %s100
      %s117 = sphi 0, %s101
      %s131 = sphi 0, %s133
      %s134 = sphi 0, %s131
      %s135 = sphi 0, %s134
      %s151 = sphi 0, %s135
      %s155 = sphi 0, %s155
      %s157 = sphi 0, %s155
      %s158 = sphi 0, %s157
      %s172 = sphi 0, %s158
      %s176 = sphi 0, %s176
      %s178 = sphi 0, %s176
      %s179 = sphi 0, %s178
      %s193 = sphi 0, %s179
      %s205 = sphi 0, %s207
      %s208 = sphi 0, %s205
      %s209 = sphi 0, %s208
      %s225 = sphi 0, %s209
      %s233 = sphi 0, %s235
      %s236 = sphi 0, %s233
      %s237 = sphi 0, %s236
      %s253 = sphi 0, %s237
    $region4: #{tpu_custom_call.1} parent=1 // loop_header_branch
      %31 = sbr.rel (%p29) target = $region8
    $region5: #{tpu_custom_call.1} parent=1 // loop_body
      %s33 = ssub.s32 %s28, 1
      %s34 = ssub.s32 %s28, 2
      %s44 = sadd.s32 1, %s37
      %p45 = scmp.ge.s32.totalorder %s44, 2
      %s46 = scalar_select %p45, 0, %s44
      %s47 = sadd.s32 1, %s36
      %s48 = scalar_select %p45, %s47, %s36
      %p49 = scmp.ge.s32.totalorder %s48, 2
      %s50 = scalar_select %p49, 0, %s48
      %s51 = sadd.s32 1, %s35
      %s52 = scalar_select %p49, %s51, %s35
      %p53 = scmp.ge.s32.totalorder %s52, 2
      %s54 = scalar_select %p53, 0, %s52
      %s55 = smul.u32 %s36, 2
      %s56 = sadd.s32 %s55, %s37
      %s57 = smul.u32 %s50, 2
      %s58 = sadd.s32 %s57, %s46
      %s59 = ssub.s32 %s35, %s54
      %s60 = ssub.s32 %s56, %s58
      %s61 = sor.u32 %s59, %s60
      %p62 = scmp.eq.s32.totalorder %s61, 0
      %s64 = sadd.s32 %s63, 1
      %s65 = scalar_select %p62, %s63, %s64
      %p68 = pneg %p62
      %p69 = scmp.eq.s32.totalorder %s28, 7
      %p70 = por %p68, %p69
      %p71 = scmp.ne.s32.totalorder %s63, %s66
      %p72 = scmp.eq.s32.totalorder %s28, 0
      %p73 = por %p71, %p72
      %p74 = scmp.ne.s32.totalorder %s63, %s66
      %p75 = scmp.eq.s32.totalorder %s33, 7
      %p76 = por %p74, %p75
      %p77 = scmp.ne.s32.totalorder %s66, %s67
      %p78 = scmp.eq.s32.totalorder %s33, 0
      %p79 = por %p77, %p78
      %p80 = scmp.ne.s32.totalorder %s66, %s67
      %p81 = scmp.eq.s32.totalorder %s34, 7
      %p82 = por %p80, %p81
      %p84 = scmp.ne.s32.totalorder %s67, %s83
      %p85 = scmp.eq.s32.totalorder %s34, 0
      %p86 = por %p84, %p85
      %s87 = smul.u32 %s36, 2
      %s88 = sadd.s32 %s87, %s37
      %s89 = sld [smem:[#allocation5 + %s88]]
      %s90 = smul.u32 %s50, 2
      %s91 = sadd.s32 %s90, %s46
      %s92 = sld [smem:[#allocation5 + %s91]]
      %s93 = ssub.s32 %s35, %s54
      %s94 = ssub.s32 %s89, %s92
      %s95 = sor.u32 %s93, %s94
      %p96 = scmp.eq.s32.totalorder %s95, 0
      %s98 = sadd.s32 %s97, 1
      %s99 = scalar_select %p96, %s97, %s98
      %p102 = pneg %p96
      %p103 = scmp.eq.s32.totalorder %s28, 7
      %p104 = por %p102, %p103
      %p105 = scmp.ne.s32.totalorder %s97, %s100
      %p106 = scmp.eq.s32.totalorder %s28, 0
      %p107 = por %p105, %p106
      %p108 = scmp.ne.s32.totalorder %s97, %s100
      %p109 = scmp.eq.s32.totalorder %s33, 7
      %p110 = por %p108, %p109
      %p111 = scmp.ne.s32.totalorder %s100, %s101
      %p112 = scmp.eq.s32.totalorder %s33, 0
      %p113 = por %p111, %p112
      %p114 = scmp.ne.s32.totalorder %s100, %s101
      %p115 = scmp.eq.s32.totalorder %s34, 7
      %p116 = por %p114, %p115
      %p118 = scmp.ne.s32.totalorder %s101, %s117
      %p119 = scmp.eq.s32.totalorder %s34, 0
      %p120 = por %p118, %p119
      %s121 = smul.u32 %s36, 2
      %s122 = sadd.s32 %s121, %s37
      %s123 = sld [smem:[#allocation6 + %s122]]
      %s124 = smul.u32 %s50, 2
      %s125 = sadd.s32 %s124, %s46
      %s126 = sld [smem:[#allocation6 + %s125]]
      %s127 = ssub.s32 %s35, %s54
      %s128 = ssub.s32 %s123, %s126
      %s129 = sor.u32 %s127, %s128
      %p130 = scmp.eq.s32.totalorder %s129, 0
      %s132 = sadd.s32 %s131, 1
      %s133 = scalar_select %p130, %s131, %s132
      %p136 = pneg %p130
      %p137 = scmp.eq.s32.totalorder %s28, 7
      %p138 = por %p136, %p137
      %p139 = scmp.ne.s32.totalorder %s131, %s134
      %p140 = scmp.eq.s32.totalorder %s28, 0
      %p141 = por %p139, %p140
      %p142 = scmp.ne.s32.totalorder %s131, %s134
      %p143 = scmp.eq.s32.totalorder %s33, 7
      %p144 = por %p142, %p143
      %p145 = scmp.ne.s32.totalorder %s134, %s135
      %p146 = scmp.eq.s32.totalorder %s33, 0
      %p147 = por %p145, %p146
      %p148 = scmp.ne.s32.totalorder %s134, %s135
      %p149 = scmp.eq.s32.totalorder %s34, 7
      %p150 = por %p148, %p149
      %p152 = scmp.ne.s32.totalorder %s135, %s151
      %p153 = scmp.eq.s32.totalorder %s34, 0
      %p154 = por %p152, %p153
      %s156 = sadd.s32 %s155, 1
      %p159 = scmp.eq.s32.totalorder %s28, 7
      %p160 = scmp.ne.s32.totalorder %s155, %s157
      %p161 = scmp.eq.s32.totalorder %s28, 0
      %p162 = por %p160, %p161
      %p163 = scmp.ne.s32.totalorder %s155, %s157
      %p164 = scmp.eq.s32.totalorder %s33, 7
      %p165 = por %p163, %p164
      %p166 = scmp.ne.s32.totalorder %s157, %s158
      %p167 = scmp.eq.s32.totalorder %s33, 0
      %p168 = por %p166, %p167
      %p169 = scmp.ne.s32.totalorder %s157, %s158
      %p170 = scmp.eq.s32.totalorder %s34, 7
      %p171 = por %p169, %p170
      %p173 = scmp.ne.s32.totalorder %s158, %s172
      %p174 = scmp.eq.s32.totalorder %s34, 0
      %p175 = por %p173, %p174
      %s177 = sadd.s32 %s176, 1
      %p180 = scmp.eq.s32.totalorder %s28, 7
      %p181 = scmp.ne.s32.totalorder %s176, %s178
      %p182 = scmp.eq.s32.totalorder %s28, 0
      %p183 = por %p181, %p182
      %p184 = scmp.ne.s32.totalorder %s176, %s178
      %p185 = scmp.eq.s32.totalorder %s33, 7
      %p186 = por %p184, %p185
      %p187 = scmp.ne.s32.totalorder %s178, %s179
      %p188 = scmp.eq.s32.totalorder %s33, 0
      %p189 = por %p187, %p188
      %p190 = scmp.ne.s32.totalorder %s178, %s179
      %p191 = scmp.eq.s32.totalorder %s34, 7
      %p192 = por %p190, %p191
      %p194 = scmp.ne.s32.totalorder %s179, %s193
      %p195 = scmp.eq.s32.totalorder %s34, 0
      %p196 = por %p194, %p195
      %s197 = smul.u32 %s36, 2
      %s198 = sadd.s32 %s197, %s37
      %s199 = smul.u32 %s50, 2
      %s200 = sadd.s32 %s199, %s46
      %s201 = ssub.s32 %s35, %s54
      %s202 = ssub.s32 %s198, %s200
      %s203 = sor.u32 %s201, %s202
      %p204 = scmp.eq.s32.totalorder %s203, 0
      %s206 = sadd.s32 %s205, 1
      %s207 = scalar_select %p204, %s205, %s206
      %p210 = pneg %p204
      %p211 = scmp.eq.s32.totalorder %s28, 7
      %p212 = por %p210, %p211
      %p213 = scmp.ne.s32.totalorder %s205, %s208
      %p214 = scmp.eq.s32.totalorder %s28, 0
      %p215 = por %p213, %p214
      %p216 = scmp.ne.s32.totalorder %s205, %s208
      %p217 = scmp.eq.s32.totalorder %s33, 7
      %p218 = por %p216, %p217
      %p219 = scmp.ne.s32.totalorder %s208, %s209
      %p220 = scmp.eq.s32.totalorder %s33, 0
      %p221 = por %p219, %p220
      %p222 = scmp.ne.s32.totalorder %s208, %s209
      %p223 = scmp.eq.s32.totalorder %s34, 7
      %p224 = por %p222, %p223
      %p226 = scmp.ne.s32.totalorder %s209, %s225
      %p227 = scmp.eq.s32.totalorder %s34, 0
      %p228 = por %p226, %p227
      %s229 = ssub.s32 %s35, %s54
      %s230 = ssub.s32 %s36, %s50
      %s231 = sor.u32 %s229, %s230
      %p232 = scmp.eq.s32.totalorder %s231, 0
      %s234 = sadd.s32 %s233, 1
      %s235 = scalar_select %p232, %s233, %s234
      %p238 = pneg %p232
      %p239 = scmp.eq.s32.totalorder %s28, 7
      %p240 = por %p238, %p239
      %p241 = scmp.ne.s32.totalorder %s233, %s236
      %p242 = scmp.eq.s32.totalorder %s28, 0
      %p243 = por %p241, %p242
      %p244 = scmp.ne.s32.totalorder %s233, %s236
      %p245 = scmp.eq.s32.totalorder %s33, 7
      %p246 = por %p244, %p245
      %p247 = scmp.ne.s32.totalorder %s236, %s237
      %p248 = scmp.eq.s32.totalorder %s33, 0
      %p249 = por %p247, %p248
      %p250 = scmp.ne.s32.totalorder %s236, %s237
      %p251 = scmp.eq.s32.totalorder %s34, 7
      %p252 = por %p250, %p251
      %p254 = scmp.ne.s32.totalorder %s237, %s253
      %p255 = scmp.eq.s32.totalorder %s34, 0
      %p256 = por %p254, %p255
      %p257 = scmp.le.s32.totalorder 1, %s28
      %p258 = scmp.lt.s32.totalorder %s28, 9
      %p259 = pnand %p257, %p258
      %p260 = pneg %p259
      // Predicated region
      $region9: #{tpu_custom_call.1} parent=5 // pred_check
        _
      $region10: #{tpu_custom_call.1} parent=5 // pred_check_branch
        %262 = sbr.rel (%p259) target = $region12
      $region11: #{tpu_custom_call.1} parent=5 // pred_region
        %s263 = ssub.s32 %s28, 1
        // Predicated region
        $region13: #{tpu_custom_call.1} parent=11 // pred_check
          %p264 = pneg %p168
        $region14: #{tpu_custom_call.1} parent=11 // pred_check_branch
          %266 = sbr.rel (%p264) target = $region16
        $region15: #{tpu_custom_call.1} parent=11 // pred_region
          _
        $region16: #{tpu_custom_call.1} parent=11 // pred_fallthru
          _
        // Predicated region
        $region17: #{tpu_custom_call.1} parent=11 // pred_check
          %p267 = pneg %p189
        $region18: #{tpu_custom_call.1} parent=11 // pred_check_branch
          %269 = sbr.rel (%p267) target = $region20
        $region19: #{tpu_custom_call.1} parent=11 // pred_region
          _
        $region20: #{tpu_custom_call.1} parent=11 // pred_fallthru
          _
      $region12: #{tpu_custom_call.1} parent=5 // pred_fallthru
        _
      %p270 = scmp.lt.s32.totalorder %s28, 8
      // Predicated region
      $region21: #{tpu_custom_call.1} parent=5 // pred_check
        %p271 = pneg %p270
      $region22: #{tpu_custom_call.1} parent=5 // pred_check_branch
        %273 = sbr.rel (%p271) target = $region24
      $region23: #{tpu_custom_call.1} parent=5 // pred_region
        // Predicated region
        $region25: #{tpu_custom_call.1} parent=23 // pred_check
          %p274 = pneg %p73
        $region26: #{tpu_custom_call.1} parent=23 // pred_check_branch
          %276 = sbr.rel (%p274) target = $region28
        $region27: #{tpu_custom_call.1} parent=23 // pred_region
          %s277 = smul.u32 %s36, 2
          %s278 = sadd.s32 %s277, %s37
          %s279 = smul.u32 4, %s278
          %p280 = scmp.lt.s32.totalorder %s35, 1
          %s281 = scalar_select %p280, %s35, 1
          %p282 = scmp.lt.s32.totalorder %s279, 15
          %s283 = scalar_select %p282, %s279, 15
          %s284 = smul.addr %s283, 2
          %s285 = smul.addr %s281, 32
          %s286 = sadd.s32 %s284, %s285
          %s287 = smul.addr %s286, 8
          %s288 = scalar_lea.vmem %s2, %s287
          %s289 = smul.u32 %s36, 2
          %s290 = sadd.s32 %s289, %s37
          %s291 = smul.u32 4, %s290
        $region28: #{tpu_custom_call.1} parent=23 // pred_fallthru
          _
        // Predicated region
        $region29: #{tpu_custom_call.1} parent=23 // pred_check
          %p292 = pneg %p107
        $region30: #{tpu_custom_call.1} parent=23 // pred_check_branch
          %294 = sbr.rel (%p292) target = $region32
        $region31: #{tpu_custom_call.1} parent=23 // pred_region
          %s295 = smul.u32 %s36, 2
          %s296 = sadd.s32 %s295, %s37
          %s297 = sld [smem:[#allocation5 + %s296]]
          %p298 = scmp.lt.s32.totalorder %s35, 1
          %s299 = scalar_select %p298, %s35, 1
          %p300 = scmp.lt.s32.totalorder %s297, 15
          %s301 = scalar_select %p300, %s297, 15
          %s302 = smul.addr %s301, 2
          %s303 = smul.addr %s299, 32
          %s304 = sadd.s32 %s302, %s303
          %s305 = smul.addr %s304, 8
          %s306 = scalar_lea.vmem %s3, %s305
          %s307 = smul.u32 %s36, 2
          %s308 = sadd.s32 %s307, %s37
          %s309 = sld [smem:[#allocation5 + %s308]]
        $region32: #{tpu_custom_call.1} parent=23 // pred_fallthru
          _
        // Predicated region
        $region33: #{tpu_custom_call.1} parent=23 // pred_check
          %p310 = pneg %p141
        $region34: #{tpu_custom_call.1} parent=23 // pred_check_branch
          %312 = sbr.rel (%p310) target = $region36
        $region35: #{tpu_custom_call.1} parent=23 // pred_region
          %s313 = smul.u32 %s36, 2
          %s314 = sadd.s32 %s313, %s37
          %s315 = sld [smem:[#allocation6 + %s314]]
          %p316 = scmp.lt.s32.totalorder %s35, 1
          %s317 = scalar_select %p316, %s35, 1
          %p318 = scmp.lt.s32.totalorder %s315, 15
          %s319 = scalar_select %p318, %s315, 15
          %s320 = smul.addr %s319, 2
          %s321 = smul.addr %s317, 32
          %s322 = sadd.s32 %s320, %s321
          %s323 = smul.addr %s322, 8
          %s324 = scalar_lea.vmem %s4, %s323
          %s325 = smul.u32 %s36, 2
          %s326 = sadd.s32 %s325, %s37
          %s327 = sld [smem:[#allocation6 + %s326]]
        $region36: #{tpu_custom_call.1} parent=23 // pred_fallthru
          _
      $region24: #{tpu_custom_call.1} parent=5 // pred_fallthru
        _
      %p328 = scmp.le.s32.totalorder 1, %s28
      %p329 = scmp.lt.s32.totalorder %s28, 9
      %p330 = pnand %p328, %p329
      %p331 = pneg %p330
      // Predicated region
      $region37: #{tpu_custom_call.1} parent=5 // pred_check
        _
      $region38: #{tpu_custom_call.1} parent=5 // pred_check_branch
        %333 = sbr.rel (%p330) target = $region40
      $region39: #{tpu_custom_call.1} parent=5 // pred_region
        %s334 = ssub.s32 %s28, 1
        %s335 = smul.u32 %s39, 2
        %s336 = sadd.s32 %s335, %s40
        %s337 = smul.u32 4, %s336
        %p338 = scmp.lt.s32.totalorder %s38, 1
        %s339 = scalar_select %p338, %s38, 1
        %p340 = scmp.lt.s32.totalorder %s337, 15
        %s341 = scalar_select %p340, %s337, 15
        %s342 = smul.addr %s341, 2
        %s343 = smul.addr %s339, 32
        %s344 = sadd.s32 %s342, %s343
        %s345 = smul.addr %s344, 8
        %s346 = scalar_lea.vmem %s2, %s345
        %p347 = pneg %p79
        %p348 = pneg %p76
        %s349 = smul.u32 %s39, 2
        %s350 = sadd.s32 %s349, %s40
        %s351 = sld [smem:[#allocation5 + %s350]]
        %p352 = scmp.lt.s32.totalorder %s38, 1
        %s353 = scalar_select %p352, %s38, 1
        %p354 = scmp.lt.s32.totalorder %s351, 15
        %s355 = scalar_select %p354, %s351, 15
        %s356 = smul.addr %s355, 2
        %s357 = smul.addr %s353, 32
        %s358 = sadd.s32 %s356, %s357
        %s359 = smul.addr %s358, 8
        %s360 = scalar_lea.vmem %s3, %s359
        %p361 = pneg %p113
        %p362 = pneg %p110
        %s363 = smul.u32 %s39, 2
        %s364 = sadd.s32 %s363, %s40
        %s365 = sld [smem:[#allocation6 + %s364]]
        %p366 = scmp.lt.s32.totalorder %s38, 1
        %s367 = scalar_select %p366, %s38, 1
        %p368 = scmp.lt.s32.totalorder %s365, 15
        %s369 = scalar_select %p368, %s365, 15
        %s370 = smul.addr %s369, 2
        %s371 = smul.addr %s367, 32
        %s372 = sadd.s32 %s370, %s371
        %s373 = smul.addr %s372, 8
        %s374 = scalar_lea.vmem %s4, %s373
        %p375 = pneg %p147
        %p376 = pneg %p144
        %p377 = pneg %p168
        %p378 = pneg %p165
        %p379 = pneg %p189
        %p380 = pneg %p186
        %p381 = pneg %p221
        %p382 = pneg %p218
        %s383 = smul.u32 %s39, 2
        %s384 = sadd.s32 %s383, %s40
        %s385 = smul.u32 4, %s384
        %p386 = scmp.lt.s32.totalorder %s38, 1
        %s387 = scalar_select %p386, %s38, 1
        %p388 = scmp.lt.s32.totalorder %s385, 15
        %s389 = scalar_select %p388, %s385, 15
        %s390 = smul.addr %s389, 2
        %s391 = smul.addr %s387, 32
        %s392 = sadd.s32 %s390, %s391
        %s393 = smul.addr %s392, 8
        %s394 = scalar_lea.vmem %s7, %s393
        %p395 = pneg %p249
        %p396 = pneg %p246
        %s397 = sand.u32 %s236, 1
        %s398 = scalar_lea.sflag [#allocation8], %s397
        %s399 = sand.u32 %s236, 1
        %s400 = smul.addr %s399, 2
        %s401 = scalar_lea.vmem [#allocation7], %s400
        %s402 = smul.u32 %s39, 2
        %s403 = sadd.s32 %s402, %s40
        %s404 = smul.u32 4, %s403
        %p405 = scmp.lt.s32.totalorder %s38, 1
        %s406 = scalar_select %p405, %s38, 1
        %p407 = scmp.lt.s32.totalorder %s404, 15
        %s408 = scalar_select %p407, %s404, 15
        %s409 = smul.addr %s408, 2
        %s410 = smul.addr %s406, 32
        %s411 = sadd.s32 %s409, %s410
        %s412 = smul.addr %s411, 8
        %s413 = scalar_lea.vmem %s2, %s412
        %s414 = smul.u32 %s39, 2
        %s415 = sadd.s32 %s414, %s40
        %s416 = smul.u32 4, %s415
        %s417 = smul.u32 %s39, 2
        %s418 = sadd.s32 %s417, %s40
        %s419 = sld [smem:[#allocation5 + %s418]]
        %p420 = scmp.lt.s32.totalorder %s38, 1
        %s421 = scalar_select %p420, %s38, 1
        %p422 = scmp.lt.s32.totalorder %s419, 15
        %s423 = scalar_select %p422, %s419, 15
        %s424 = smul.addr %s423, 2
        %s425 = smul.addr %s421, 32
        %s426 = sadd.s32 %s424, %s425
        %s427 = smul.addr %s426, 8
        %s428 = scalar_lea.vmem %s3, %s427
        %s429 = smul.u32 %s39, 2
        %s430 = sadd.s32 %s429, %s40
        %s431 = sld [smem:[#allocation5 + %s430]]
        %s432 = smul.u32 %s39, 2
        %s433 = sadd.s32 %s432, %s40
        %s434 = sld [smem:[#allocation6 + %s433]]
        %p435 = scmp.lt.s32.totalorder %s38, 1
        %s436 = scalar_select %p435, %s38, 1
        %p437 = scmp.lt.s32.totalorder %s434, 15
        %s438 = scalar_select %p437, %s434, 15
        %s439 = smul.addr %s438, 2
        %s440 = smul.addr %s436, 32
        %s441 = sadd.s32 %s439, %s440
        %s442 = smul.addr %s441, 8
        %s443 = scalar_lea.vmem %s4, %s442
        %s444 = smul.u32 %s39, 2
        %s445 = sadd.s32 %s444, %s40
        %s446 = sld [smem:[#allocation6 + %s445]]
        %s447 = smul.u32 %s39, 2
        %s448 = sadd.s32 %s447, %s40
        %s449 = smul.u32 4, %s448
        %p450 = scmp.lt.s32.totalorder %s38, 1
        %s451 = scalar_select %p450, %s38, 1
        %p452 = scmp.lt.s32.totalorder %s449, 15
        %s453 = scalar_select %p452, %s449, 15
        %s454 = smul.addr %s453, 2
        %s455 = smul.addr %s451, 32
        %s456 = sadd.s32 %s454, %s455
        %s457 = smul.addr %s456, 8
        %s458 = scalar_lea.vmem %s7, %s457
        %s459 = smul.u32 %s39, 2
        %s460 = sadd.s32 %s459, %s40
        %s461 = smul.u32 4, %s460
        %v462 = vld [vmem:[%s428] sm:$0xff]
        %v463 = vld [vmem:[%s428 + $0x8] sm:$0xff]
        %v464 = vld [vmem:[%s413] sm:$0xff]
        %v465 = vld [vmem:[%s413 + $0x8] sm:$0xff]
        %v466 = vld [vmem:[%s413 + $0x10] sm:$0xff]
        %v467 = vld [vmem:[%s413 + $0x18] sm:$0xff]
        %v468 = vld [vmem:[%s413 + $0x20] sm:$0xff]
        %v469 = vld [vmem:[%s413 + $0x28] sm:$0xff]
        %v470 = vld [vmem:[%s413 + $0x30] sm:$0xff]
        %v471 = vld [vmem:[%s413 + $0x38] sm:$0xff]
        %v472 = vld [vmem:[%s443] sm:$0xff]
        %v473 = vld [vmem:[%s443 + $0x8] sm:$0xff]
        %vm474 = vcmask 31744
        %475 = vst.msk [vmem:[#allocation2 + $0x1] sm:$0xff] %vm474, %v462
        %476 = vst.msk [vmem:[#allocation2 + $0x9] sm:$0xff] %vm474, %v463
        %s477 = scalar_lea.vmem [#allocation2], 24
        %478 = vst.msk [vmem:[%s477 + $0x1] sm:$0xff] %vm474, %v464
        %479 = vst.msk [vmem:[%s477 + $0x9] sm:$0xff] %vm474, %v465
        %480 = vst.msk [vmem:[%s477 + $0x19] sm:$0xff] %vm474, %v466
        %481 = vst.msk [vmem:[%s477 + $0x21] sm:$0xff] %vm474, %v467
        %482 = vst.msk [vmem:[%s477 + $0x31] sm:$0xff] %vm474, %v468
        %483 = vst.msk [vmem:[%s477 + $0x39] sm:$0xff] %vm474, %v469
        %484 = vst.msk [vmem:[%s477 + $0x49] sm:$0xff] %vm474, %v470
        %485 = vst.msk [vmem:[%s477 + $0x51] sm:$0xff] %vm474, %v471
        %s486 = scalar_lea.vmem [#allocation2], 120
        %487 = vst.msk [vmem:[%s486 + $0x1] sm:$0xff] %vm474, %v472
        %488 = vst.msk [vmem:[%s486 + $0x9] sm:$0xff] %vm474, %v473
        %v489 = vld [vmem:[#allocation2 + $0x2] sm:$0x1]
        %v490 = vld [vmem:[#allocation2 + $0x1a] sm:$0x1]
        %v491 = vld [vmem:[#allocation2 + $0x32] sm:$0x1]
        %v492 = vld [vmem:[#allocation2 + $0x4a] sm:$0x1]
        %v493 = vld [vmem:[#allocation2 + $0x62] sm:$0x1]
        %v494 = vld [vmem:[#allocation2 + $0x7a] sm:$0x1]
        %vm495 = vcmask 24576
        %496 = vst.msk [vmem:[#allocation2] sm:$0x1] %vm495, %v489
        %497 = vst.msk [vmem:[#allocation2 + $0x18] sm:$0x1] %vm495, %v490
        %498 = vst.msk [vmem:[#allocation2 + $0x30] sm:$0x1] %vm495, %v491
        %499 = vst.msk [vmem:[#allocation2 + $0x48] sm:$0x1] %vm495, %v492
        %500 = vst.msk [vmem:[#allocation2 + $0x60] sm:$0x1] %vm495, %v493
        %501 = vst.msk [vmem:[#allocation2 + $0x78] sm:$0x1] %vm495, %v494
        %v502 = vld [vmem:[#allocation2 + $0xf] sm:$0x1]
        %v503 = vld [vmem:[#allocation2 + $0x27] sm:$0x1]
        %v504 = vld [vmem:[#allocation2 + $0x3f] sm:$0x1]
        %v505 = vld [vmem:[#allocation2 + $0x57] sm:$0x1]
        %v506 = vld [vmem:[#allocation2 + $0x6f] sm:$0x1]
        %v507 = vld [vmem:[#allocation2 + $0x87] sm:$0x1]
        %508 = vst.msk [vmem:[#allocation2 + $0x11] sm:$0x1] %vm495, %v502
        %509 = vst.msk [vmem:[#allocation2 + $0x29] sm:$0x1] %vm495, %v503
        %510 = vst.msk [vmem:[#allocation2 + $0x41] sm:$0x1] %vm495, %v504
        %511 = vst.msk [vmem:[#allocation2 + $0x59] sm:$0x1] %vm495, %v505
        %512 = vst.msk [vmem:[#allocation2 + $0x71] sm:$0x1] %vm495, %v506
        %513 = vst.msk [vmem:[#allocation2 + $0x89] sm:$0x1] %vm495, %v507
        %v514 = vld [vmem:[#allocation2] sm:$0xff]
        %v515 = vld [vmem:[#allocation2 + $0x8] sm:$0xff]
        %v516 = vld [vmem:[#allocation2 + $0x18] sm:$0xff]
        %v517 = vld [vmem:[#allocation2 + $0x20] sm:$0xff]
        %v518 = vld [vmem:[#allocation2 + $0x30] sm:$0xff]
        %v519 = vld [vmem:[#allocation2 + $0x38] sm:$0xff]
        %v520 = vld [vmem:[#allocation2 + $0x48] sm:$0xff]
        %v521 = vld [vmem:[#allocation2 + $0x50] sm:$0xff]
        %v522 = vld [vmem:[#allocation2 + $0x60] sm:$0xff]
        %v523 = vld [vmem:[#allocation2 + $0x68] sm:$0xff]
        %v524 = vld [vmem:[#allocation2 + $0x78] sm:$0xff]
        %v525 = vld [vmem:[#allocation2 + $0x80] sm:$0xff]
        %526 = vst.msk [vmem:[#allocation3] sm:$0xff] %vm474, %v514
        %527 = vst.msk [vmem:[#allocation3 + $0x8] sm:$0xff] %vm474, %v515
        %528 = vst.msk [vmem:[#allocation3 + $0x10] sm:$0xff] %vm474, %v516
        %529 = vst.msk [vmem:[#allocation3 + $0x18] sm:$0xff] %vm474, %v517
        %530 = vst.msk [vmem:[#allocation3 + $0x20] sm:$0xff] %vm474, %v518
        %531 = vst.msk [vmem:[#allocation3 + $0x28] sm:$0xff] %vm474, %v519
        %532 = vst.msk [vmem:[#allocation3 + $0x30] sm:$0xff] %vm474, %v520
        %533 = vst.msk [vmem:[#allocation3 + $0x38] sm:$0xff] %vm474, %v521
        %534 = vst.msk [vmem:[#allocation3 + $0x40] sm:$0xff] %vm474, %v522
        %535 = vst.msk [vmem:[#allocation3 + $0x48] sm:$0xff] %vm474, %v523
        %536 = vst.msk [vmem:[#allocation3 + $0x50] sm:$0xff] %vm474, %v524
        %537 = vst.msk [vmem:[#allocation3 + $0x58] sm:$0xff] %vm474, %v525
        %v538 = vld [vmem:[#allocation2 + $0x1] sm:$0xff]
        %v539 = vld [vmem:[#allocation2 + $0x9] sm:$0xff]
        %v540 = vld [vmem:[#allocation2 + $0x19] sm:$0xff]
        %v541 = vld [vmem:[#allocation2 + $0x21] sm:$0xff]
        %v542 = vld [vmem:[#allocation2 + $0x31] sm:$0xff]
        %v543 = vld [vmem:[#allocation2 + $0x39] sm:$0xff]
        %v544 = vld [vmem:[#allocation2 + $0x49] sm:$0xff]
        %v545 = vld [vmem:[#allocation2 + $0x51] sm:$0xff]
        %v546 = vld [vmem:[#allocation2 + $0x61] sm:$0xff]
        %v547 = vld [vmem:[#allocation2 + $0x69] sm:$0xff]
        %v548 = vld [vmem:[#allocation2 + $0x79] sm:$0xff]
        %v549 = vld [vmem:[#allocation2 + $0x81] sm:$0xff]
        %562 = vrot.lane.b32.xlu0 %v538, 4
        %v563 = vpop.permute.xlu0 %562
        %564 = vrot.lane.b32.xlu0 %v539, 4
        %v565 = vpop.permute.xlu0 %564
        %566 = vrot.lane.b32.xlu0 %v540, 4
        %v567 = vpop.permute.xlu0 %566
        %568 = vrot.lane.b32.xlu0 %v541, 4
        %v569 = vpop.permute.xlu0 %568
        %570 = vrot.lane.b32.xlu0 %v542, 4
        %v571 = vpop.permute.xlu0 %570
        %572 = vrot.lane.b32.xlu0 %v543, 4
        %v573 = vpop.permute.xlu0 %572
        %574 = vrot.lane.b32.xlu0 %v544, 4
        %v575 = vpop.permute.xlu0 %574
        %576 = vrot.lane.b32.xlu0 %v545, 4
        %v577 = vpop.permute.xlu0 %576
        %578 = vrot.lane.b32.xlu0 %v546, 4
        %v579 = vpop.permute.xlu0 %578
        %580 = vrot.lane.b32.xlu0 %v547, 4
        %v581 = vpop.permute.xlu0 %580
        %582 = vrot.lane.b32.xlu0 %v548, 4
        %v583 = vpop.permute.xlu0 %582
        %584 = vrot.lane.b32.xlu0 %v549, 4
        %v585 = vpop.permute.xlu0 %584
        %vm598 = vcmask 64544
        %599 = vst.msk [vmem:[#allocation3] sm:$0xff] %vm598, %v563
        %600 = vst.msk [vmem:[#allocation3 + $0x8] sm:$0xff] %vm598, %v565
        %601 = vst.msk [vmem:[#allocation3 + $0x10] sm:$0xff] %vm598, %v567
        %602 = vst.msk [vmem:[#allocation3 + $0x18] sm:$0xff] %vm598, %v569
        %603 = vst.msk [vmem:[#allocation3 + $0x20] sm:$0xff] %vm598, %v571
        %604 = vst.msk [vmem:[#allocation3 + $0x28] sm:$0xff] %vm598, %v573
        %605 = vst.msk [vmem:[#allocation3 + $0x30] sm:$0xff] %vm598, %v575
        %606 = vst.msk [vmem:[#allocation3 + $0x38] sm:$0xff] %vm598, %v577
        %607 = vst.msk [vmem:[#allocation3 + $0x40] sm:$0xff] %vm598, %v579
        %608 = vst.msk [vmem:[#allocation3 + $0x48] sm:$0xff] %vm598, %v581
        %609 = vst.msk [vmem:[#allocation3 + $0x50] sm:$0xff] %vm598, %v583
        %610 = vst.msk [vmem:[#allocation3 + $0x58] sm:$0xff] %vm598, %v585
        %v611 = vld [vmem:[#allocation2 + $0x2] sm:$0xff]
        %v612 = vld [vmem:[#allocation2 + $0xa] sm:$0xff]
        %v613 = vld [vmem:[#allocation2 + $0x1a] sm:$0xff]
        %v614 = vld [vmem:[#allocation2 + $0x22] sm:$0xff]
        %v615 = vld [vmem:[#allocation2 + $0x32] sm:$0xff]
        %v616 = vld [vmem:[#allocation2 + $0x3a] sm:$0xff]
        %v617 = vld [vmem:[#allocation2 + $0x4a] sm:$0xff]
        %v618 = vld [vmem:[#allocation2 + $0x52] sm:$0xff]
        %v619 = vld [vmem:[#allocation2 + $0x62] sm:$0xff]
        %v620 = vld [vmem:[#allocation2 + $0x6a] sm:$0xff]
        %v621 = vld [vmem:[#allocation2 + $0x7a] sm:$0xff]
        %v622 = vld [vmem:[#allocation2 + $0x82] sm:$0xff]
        %635 = vrot.lane.b32.xlu0 %v611, 8
        %v636 = vpop.permute.xlu0 %635
        %637 = vrot.lane.b32.xlu0 %v612, 8
        %v638 = vpop.permute.xlu0 %637
        %639 = vrot.lane.b32.xlu0 %v613, 8
        %v640 = vpop.permute.xlu0 %639
        %641 = vrot.lane.b32.xlu0 %v614, 8
        %v642 = vpop.permute.xlu0 %641
        %643 = vrot.lane.b32.xlu0 %v615, 8
        %v644 = vpop.permute.xlu0 %643
        %645 = vrot.lane.b32.xlu0 %v616, 8
        %v646 = vpop.permute.xlu0 %645
        %647 = vrot.lane.b32.xlu0 %v617, 8
        %v648 = vpop.permute.xlu0 %647
        %649 = vrot.lane.b32.xlu0 %v618, 8
        %v650 = vpop.permute.xlu0 %649
        %651 = vrot.lane.b32.xlu0 %v619, 8
        %v652 = vpop.permute.xlu0 %651
        %653 = vrot.lane.b32.xlu0 %v620, 8
        %v654 = vpop.permute.xlu0 %653
        %655 = vrot.lane.b32.xlu0 %v621, 8
        %v656 = vpop.permute.xlu0 %655
        %657 = vrot.lane.b32.xlu0 %v622, 8
        %v658 = vpop.permute.xlu0 %657
        %vm671 = vcmask 97344
        %672 = vst.msk [vmem:[#allocation3] sm:$0xff] %vm671, %v636
        %673 = vst.msk [vmem:[#allocation3 + $0x8] sm:$0xff] %vm671, %v638
        %674 = vst.msk [vmem:[#allocation3 + $0x10] sm:$0xff] %vm671, %v640
        %675 = vst.msk [vmem:[#allocation3 + $0x18] sm:$0xff] %vm671, %v642
        %676 = vst.msk [vmem:[#allocation3 + $0x20] sm:$0xff] %vm671, %v644
        %677 = vst.msk [vmem:[#allocation3 + $0x28] sm:$0xff] %vm671, %v646
        %678 = vst.msk [vmem:[#allocation3 + $0x30] sm:$0xff] %vm671, %v648
        %679 = vst.msk [vmem:[#allocation3 + $0x38] sm:$0xff] %vm671, %v650
        %680 = vst.msk [vmem:[#allocation3 + $0x40] sm:$0xff] %vm671, %v652
        %681 = vst.msk [vmem:[#allocation3 + $0x48] sm:$0xff] %vm671, %v654
        %682 = vst.msk [vmem:[#allocation3 + $0x50] sm:$0xff] %vm671, %v656
        %683 = vst.msk [vmem:[#allocation3 + $0x58] sm:$0xff] %vm671, %v658
        %v684 = vld [vmem:[#allocation3] sm:$0xff]
        %v685 = vld [vmem:[#allocation3 + $0x8] sm:$0xff]
        %v686 = vld [vmem:[#allocation3 + $0x10] sm:$0xff]
        %v687 = vld [vmem:[#allocation3 + $0x18] sm:$0xff]
        %v688 = vld [vmem:[#allocation3 + $0x20] sm:$0xff]
        %v689 = vld [vmem:[#allocation3 + $0x28] sm:$0xff]
        %v690 = vld [vmem:[#allocation3 + $0x30] sm:$0xff]
        %v691 = vld [vmem:[#allocation3 + $0x38] sm:$0xff]
        %v692 = vld [vmem:[%s5] sm:$0xff]
        %v693 = vld [vmem:[%s5 + $0x8] sm:$0xf]
        %v694 = vld [vmem:[#allocation3 + $0x40] sm:$0xff]
        %v695 = vld [vmem:[#allocation3 + $0x48] sm:$0xff]
        %s696 = scalar_lea.vmem %s5, 16
        %v697 = vld [vmem:[%s696] sm:$0xff]
        %v698 = vld [vmem:[%s696 + $0x8] sm:$0xf]
        %vm699 = vcmask 97280
        %v701 = vsel %vm699, %v686, 0
        %v704 = vsel %vm699, %v687, 0
        %v707 = vsel %vm699, %v688, 0
        %v710 = vsel %vm699, %v689, 0
        %v713 = vsel %vm699, %v690, 0
        %v716 = vsel %vm699, %v691, 0
        %v719 = vsel %vm699, %v694, 0
        %v722 = vsel %vm699, %v695, 0
        %vm724 = vcmask 1043456
        %v726 = vsel %vm724, %v698, 0
        %728 = vmatprep.subr.mxu0 0.0
        %729 = vmatpush1.msra.mxu0 %v697
        %730 = vmatprep.subr.mxu0 0.0
        %731 = vmatpush1.msra.mxu0 %v726
        %732 = vmatprep.subr.mxu0 0.0
        %733 = vmatpush1.msra.mxu0 0.0
        %734 = vmatprep.subr.mxu0 0.0
        %735 = vmatpush1.msra.mxu0 0.0
        %736 = vmatprep.subr.mxu0 0.0
        %737 = vmatpush1.msra.mxu0 0.0
        %738 = vmatprep.subr.mxu0 0.0
        %739 = vmatpush1.msra.mxu0 0.0
        %740 = vmatprep.subr.mxu0 0.0
        %741 = vmatpush1.msra.mxu0 0.0
        %742 = vmatprep.subr.mxu0 0.0
        %743 = vmatpush1.msra.mxu0 0.0
        %744 = vmatprep.subr.mxu0 0.0
        %745 = vmatpush1.msra.mxu0 0.0
        %746 = vmatprep.subr.mxu0 0.0
        %747 = vmatpush1.msra.mxu0 0.0
        %748 = vmatprep.subr.mxu0 0.0
        %749 = vmatpush1.msra.mxu0 0.0
        %750 = vmatprep.subr.mxu0 0.0
        %751 = vmatpush1.msra.mxu0 0.0
        %752 = vmatprep.subr.mxu0 0.0
        %753 = vmatpush1.msra.mxu0 0.0
        %754 = vmatprep.subr.mxu0 0.0
        %755 = vmatpush1.msra.mxu0 0.0
        %756 = vmatprep.subr.mxu0 0.0
        %757 = vmatpush1.msra.mxu0 0.0
        %758 = vmatprep.subr.mxu0 0.0
        %759 = vmatpush1.msra.mxu0 0.0
        %760 = vmatprep.subr.mxu0 0.0
        %761 = vmatpush1.msra.mxu0 0.0
        %762 = vmatprep.subr.mxu0 0.0
        %763 = vmatpush1.msra.mxu0 0.0
        %764 = vmatprep.subr.mxu0 0.0
        %765 = vmatpush1.msra.mxu0 0.0
        %766 = vmatprep.subr.mxu0 0.0
        %767 = vmatpush1.msra.mxu0 0.0
        %768 = vmatprep.subr.mxu0 0.0
        %769 = vmatpush1.msra.mxu0 0.0
        %770 = vmatprep.subr.mxu0 0.0
        %771 = vmatpush1.msra.mxu0 0.0
        %772 = vmatprep.subr.mxu0 0.0
        %773 = vmatpush1.msra.mxu0 0.0
        %774 = vmatprep.subr.mxu0 0.0
        %775 = vmatpush1.msra.mxu0 0.0
        %776 = vmatprep.subr.mxu0 0.0
        %777 = vmatpush1.msra.mxu0 0.0
        %778 = vmatprep.subr.mxu0 0.0
        %779 = vmatpush1.msra.mxu0 0.0
        %780 = vmatprep.subr.mxu0 0.0
        %781 = vmatpush1.msra.mxu0 0.0
        %782 = vmatprep.subr.mxu0 0.0
        %783 = vmatpush1.msra.mxu0 0.0
        %784 = vmatprep.subr.mxu0 0.0
        %785 = vmatpush1.msra.mxu0 0.0
        %786 = vmatprep.subr.mxu0 0.0
        %787 = vmatpush1.msra.mxu0 0.0
        %788 = vmatprep.subr.mxu0 0.0
        %789 = vmatpush1.msra.mxu0 0.0
        %790 = vmatprep.subr.mxu0 0.0
        %791 = vmatpush1.msra.mxu0 0.0
        %792 = vmatprep.mubr.f32.mxu0 0.0
        %793 = vmatmul.mubr.f32.gmra.mrb[0].mxu0 %v701
        %v794 = vpop.f32.mrb[0].mxu0
        %v795 = vadd.f32 0.0, %v794
        %v796 = vpop.f32.mrb[0].mxu0
        %797 = vmatprep.mubr.f32.mxu0 0.0
        %798 = vmatmul.mubr.f32.gmra.mrb[0].mxu0 %v704
        %v799 = vpop.f32.mrb[0].mxu0
        %v800 = vadd.f32 0.0, %v799
        %v801 = vpop.f32.mrb[0].mxu0
        %802 = vmatprep.mubr.f32.mxu0 0.0
        %803 = vmatmul.mubr.f32.gmra.mrb[0].mxu0 %v707
        %v804 = vpop.f32.mrb[0].mxu0
        %v805 = vadd.f32 0.0, %v804
        %v806 = vpop.f32.mrb[0].mxu0
        %807 = vmatprep.mubr.f32.mxu0 0.0
        %808 = vmatmul.mubr.f32.gmra.mrb[0].mxu0 %v710
        %v809 = vpop.f32.mrb[0].mxu0
        %v810 = vadd.f32 0.0, %v809
        %v811 = vpop.f32.mrb[0].mxu0
        %812 = vmatprep.mubr.f32.mxu0 0.0
        %813 = vmatmul.mubr.f32.gmra.mrb[0].mxu0 %v713
        %v814 = vpop.f32.mrb[0].mxu0
        %v815 = vadd.f32 0.0, %v814
        %v816 = vpop.f32.mrb[0].mxu0
        %817 = vmatprep.mubr.f32.mxu0 0.0
        %818 = vmatmul.mubr.f32.gmra.mrb[0].mxu0 %v716
        %v819 = vpop.f32.mrb[0].mxu0
        %v820 = vadd.f32 0.0, %v819
        %v821 = vpop.f32.mrb[0].mxu0
        %822 = vmatprep.mubr.f32.mxu0 0.0
        %823 = vmatmul.mubr.f32.gmra.mrb[0].mxu0 %v719
        %v824 = vpop.f32.mrb[0].mxu0
        %v825 = vadd.f32 0.0, %v824
        %v826 = vpop.f32.mrb[0].mxu0
        %827 = vmatprep.mubr.f32.mxu0 0.0
        %828 = vmatmul.mubr.f32.gmra.mrb[0].mxu0 %v722
        %v829 = vpop.f32.mrb[0].mxu0
        %v830 = vadd.f32 0.0, %v829
        %v831 = vpop.f32.mrb[0].mxu0
        %832 = vdwg.mxu0
        %v834 = vsel %vm699, %v684, 0
        %v837 = vsel %vm699, %v685, 0
        %v840 = vsel %vm724, %v693, 0
        %842 = vmatprep.subr.mxu0 0.0
        %843 = vmatpush1.msra.mxu0 %v692
        %844 = vmatprep.subr.mxu0 0.0
        %845 = vmatpush1.msra.mxu0 %v840
        %846 = vmatprep.subr.mxu0 0.0
        %847 = vmatpush1.msra.mxu0 0.0
        %848 = vmatprep.subr.mxu0 0.0
        %849 = vmatpush1.msra.mxu0 0.0
        %850 = vmatprep.subr.mxu0 0.0
        %851 = vmatpush1.msra.mxu0 0.0
        %852 = vmatprep.subr.mxu0 0.0
        %853 = vmatpush1.msra.mxu0 0.0
        %854 = vmatprep.subr.mxu0 0.0
        %855 = vmatpush1.msra.mxu0 0.0
        %856 = vmatprep.subr.mxu0 0.0
        %857 = vmatpush1.msra.mxu0 0.0
        %858 = vmatprep.subr.mxu0 0.0
        %859 = vmatpush1.msra.mxu0 0.0
        %860 = vmatprep.subr.mxu0 0.0
        %861 = vmatpush1.msra.mxu0 0.0
        %862 = vmatprep.subr.mxu0 0.0
        %863 = vmatpush1.msra.mxu0 0.0
        %864 = vmatprep.subr.mxu0 0.0
        %865 = vmatpush1.msra.mxu0 0.0
        %866 = vmatprep.subr.mxu0 0.0
        %867 = vmatpush1.msra.mxu0 0.0
        %868 = vmatprep.subr.mxu0 0.0
        %869 = vmatpush1.msra.mxu0 0.0
        %870 = vmatprep.subr.mxu0 0.0
        %871 = vmatpush1.msra.mxu0 0.0
        %872 = vmatprep.subr.mxu0 0.0
        %873 = vmatpush1.msra.mxu0 0.0
        %874 = vmatprep.subr.mxu0 0.0
        %875 = vmatpush1.msra.mxu0 0.0
        %876 = vmatprep.subr.mxu0 0.0
        %877 = vmatpush1.msra.mxu0 0.0
        %878 = vmatprep.subr.mxu0 0.0
        %879 = vmatpush1.msra.mxu0 0.0
        %880 = vmatprep.subr.mxu0 0.0
        %881 = vmatpush1.msra.mxu0 0.0
        %882 = vmatprep.subr.mxu0 0.0
        %883 = vmatpush1.msra.mxu0 0.0
        %884 = vmatprep.subr.mxu0 0.0
        %885 = vmatpush1.msra.mxu0 0.0
        %886 = vmatprep.subr.mxu0 0.0
        %887 = vmatpush1.msra.mxu0 0.0
        %888 = vmatprep.subr.mxu0 0.0
        %889 = vmatpush1.msra.mxu0 0.0
        %890 = vmatprep.subr.mxu0 0.0
        %891 = vmatpush1.msra.mxu0 0.0
        %892 = vmatprep.subr.mxu0 0.0
        %893 = vmatpush1.msra.mxu0 0.0
        %894 = vmatprep.subr.mxu0 0.0
        %895 = vmatpush1.msra.mxu0 0.0
        %896 = vmatprep.subr.mxu0 0.0
        %897 = vmatpush1.msra.mxu0 0.0
        %898 = vmatprep.subr.mxu0 0.0
        %899 = vmatpush1.msra.mxu0 0.0
        %900 = vmatprep.subr.mxu0 0.0
        %901 = vmatpush1.msra.mxu0 0.0
        %902 = vmatprep.subr.mxu0 0.0
        %903 = vmatpush1.msra.mxu0 0.0
        %904 = vmatprep.subr.mxu0 0.0
        %905 = vmatpush1.msra.mxu0 0.0
        %906 = vmatprep.mubr.f32.mxu0 0.0
        %907 = vmatmul.mubr.f32.gmra.mrb[0].mxu0 %v834
        %v908 = vpop.f32.mrb[0].mxu0
        %v909 = vadd.f32 %v795, %v908
        %v910 = vpop.f32.mrb[0].mxu0
        %911 = vmatprep.mubr.f32.mxu0 0.0
        %912 = vmatmul.mubr.f32.gmra.mrb[0].mxu0 %v837
        %v913 = vpop.f32.mrb[0].mxu0
        %v914 = vadd.f32 %v800, %v913
        %v915 = vpop.f32.mrb[0].mxu0
        %916 = vmatprep.mubr.f32.mxu0 0.0
        %917 = vmatmul.mubr.f32.gmra.mrb[0].mxu0 %v701
        %v918 = vpop.f32.mrb[0].mxu0
        %v919 = vadd.f32 %v805, %v918
        %v920 = vpop.f32.mrb[0].mxu0
        %921 = vmatprep.mubr.f32.mxu0 0.0
        %922 = vmatmul.mubr.f32.gmra.mrb[0].mxu0 %v704
        %v923 = vpop.f32.mrb[0].mxu0
        %v924 = vadd.f32 %v810, %v923
        %v925 = vpop.f32.mrb[0].mxu0
        %926 = vmatprep.mubr.f32.mxu0 0.0
        %927 = vmatmul.mubr.f32.gmra.mrb[0].mxu0 %v707
        %v928 = vpop.f32.mrb[0].mxu0
        %v929 = vadd.f32 %v815, %v928
        %v930 = vpop.f32.mrb[0].mxu0
        %931 = vmatprep.mubr.f32.mxu0 0.0
        %932 = vmatmul.mubr.f32.gmra.mrb[0].mxu0 %v710
        %v933 = vpop.f32.mrb[0].mxu0
        %v934 = vadd.f32 %v820, %v933
        %v935 = vpop.f32.mrb[0].mxu0
        %936 = vmatprep.mubr.f32.mxu0 0.0
        %937 = vmatmul.mubr.f32.gmra.mrb[0].mxu0 %v713
        %v938 = vpop.f32.mrb[0].mxu0
        %v939 = vadd.f32 %v825, %v938
        %v940 = vpop.f32.mrb[0].mxu0
        %941 = vmatprep.mubr.f32.mxu0 0.0
        %942 = vmatmul.mubr.f32.gmra.mrb[0].mxu0 %v716
        %v943 = vpop.f32.mrb[0].mxu0
        %v944 = vadd.f32 %v830, %v943
        %v945 = vpop.f32.mrb[0].mxu0
        %946 = vdwg.mxu0
        %v947 = vld [vmem:[#allocation3 + $0x20] sm:$0xff]
        %v948 = vld [vmem:[#allocation3 + $0x28] sm:$0xff]
        %v949 = vld [vmem:[#allocation3 + $0x30] sm:$0xff]
        %v950 = vld [vmem:[#allocation3 + $0x38] sm:$0xff]
        %v951 = vld [vmem:[#allocation3 + $0x40] sm:$0xff]
        %v952 = vld [vmem:[#allocation3 + $0x48] sm:$0xff]
        %v953 = vld [vmem:[#allocation3 + $0x50] sm:$0xff]
        %v954 = vld [vmem:[#allocation3 + $0x58] sm:$0xff]
        %s955 = scalar_lea.vmem %s5, 32
        %v956 = vld [vmem:[%s955] sm:$0xff]
        %v957 = vld [vmem:[%s955 + $0x8] sm:$0xf]
        %v959 = vsel %vm699, %v947, 0
        %v962 = vsel %vm699, %v948, 0
        %v965 = vsel %vm699, %v949, 0
        %v968 = vsel %vm699, %v950, 0
        %v971 = vsel %vm699, %v951, 0
        %v974 = vsel %vm699, %v952, 0
        %v977 = vsel %vm699, %v953, 0
        %v980 = vsel %vm699, %v954, 0
        %v983 = vsel %vm724, %v957, 0
        %985 = vmatprep.subr.mxu0 0.0
        %986 = vmatpush1.msra.mxu0 %v956
        %987 = vmatprep.subr.mxu0 0.0
        %988 = vmatpush1.msra.mxu0 %v983
        %989 = vmatprep.subr.mxu0 0.0
        %990 = vmatpush1.msra.mxu0 0.0
        %991 = vmatprep.subr.mxu0 0.0
        %992 = vmatpush1.msra.mxu0 0.0
        %993 = vmatprep.subr.mxu0 0.0
        %994 = vmatpush1.msra.mxu0 0.0
        %995 = vmatprep.subr.mxu0 0.0
        %996 = vmatpush1.msra.mxu0 0.0
        %997 = vmatprep.subr.mxu0 0.0
        %998 = vmatpush1.msra.mxu0 0.0
        %999 = vmatprep.subr.mxu0 0.0
        %1000 = vmatpush1.msra.mxu0 0.0
        %1001 = vmatprep.subr.mxu0 0.0
        %1002 = vmatpush1.msra.mxu0 0.0
        %1003 = vmatprep.subr.mxu0 0.0
        %1004 = vmatpush1.msra.mxu0 0.0
        %1005 = vmatprep.subr.mxu0 0.0
        %1006 = vmatpush1.msra.mxu0 0.0
        %1007 = vmatprep.subr.mxu0 0.0
        %1008 = vmatpush1.msra.mxu0 0.0
        %1009 = vmatprep.subr.mxu0 0.0
        %1010 = vmatpush1.msra.mxu0 0.0
        %1011 = vmatprep.subr.mxu0 0.0
        %1012 = vmatpush1.msra.mxu0 0.0
        %1013 = vmatprep.subr.mxu0 0.0
        %1014 = vmatpush1.msra.mxu0 0.0
        %1015 = vmatprep.subr.mxu0 0.0
        %1016 = vmatpush1.msra.mxu0 0.0
        %1017 = vmatprep.subr.mxu0 0.0
        %1018 = vmatpush1.msra.mxu0 0.0
        %1019 = vmatprep.subr.mxu0 0.0
        %1020 = vmatpush1.msra.mxu0 0.0
        %1021 = vmatprep.subr.mxu0 0.0
        %1022 = vmatpush1.msra.mxu0 0.0
        %1023 = vmatprep.subr.mxu0 0.0
        %1024 = vmatpush1.msra.mxu0 0.0
        %1025 = vmatprep.subr.mxu0 0.0
        %1026 = vmatpush1.msra.mxu0 0.0
        %1027 = vmatprep.subr.mxu0 0.0
        %1028 = vmatpush1.msra.mxu0 0.0
        %1029 = vmatprep.subr.mxu0 0.0
        %1030 = vmatpush1.msra.mxu0 0.0
        %1031 = vmatprep.subr.mxu0 0.0
        %1032 = vmatpush1.msra.mxu0 0.0
        %1033 = vmatprep.subr.mxu0 0.0
        %1034 = vmatpush1.msra.mxu0 0.0
        %1035 = vmatprep.subr.mxu0 0.0
        %1036 = vmatpush1.msra.mxu0 0.0
        %1037 = vmatprep.subr.mxu0 0.0
        %1038 = vmatpush1.msra.mxu0 0.0
        %1039 = vmatprep.subr.mxu0 0.0
        %1040 = vmatpush1.msra.mxu0 0.0
        %1041 = vmatprep.subr.mxu0 0.0
        %1042 = vmatpush1.msra.mxu0 0.0
        %1043 = vmatprep.subr.mxu0 0.0
        %1044 = vmatpush1.msra.mxu0 0.0
        %1045 = vmatprep.subr.mxu0 0.0
        %1046 = vmatpush1.msra.mxu0 0.0
        %1047 = vmatprep.subr.mxu0 0.0
        %1048 = vmatpush1.msra.mxu0 0.0
        %1049 = vmatprep.mubr.f32.mxu0 0.0
        %1050 = vmatmul.mubr.f32.gmra.mrb[0].mxu0 %v959
        %v1051 = vpop.f32.mrb[0].mxu0
        %v1052 = vadd.f32 0.0, %v1051
        %v1053 = vpop.f32.mrb[0].mxu0
        %1054 = vmatprep.mubr.f32.mxu0 0.0
        %1055 = vmatmul.mubr.f32.gmra.mrb[0].mxu0 %v962
        %v1056 = vpop.f32.mrb[0].mxu0
        %v1057 = vadd.f32 0.0, %v1056
        %v1058 = vpop.f32.mrb[0].mxu0
        %1059 = vmatprep.mubr.f32.mxu0 0.0
        %1060 = vmatmul.mubr.f32.gmra.mrb[0].mxu0 %v965
        %v1061 = vpop.f32.mrb[0].mxu0
        %v1062 = vadd.f32 0.0, %v1061
        %v1063 = vpop.f32.mrb[0].mxu0
        %1064 = vmatprep.mubr.f32.mxu0 0.0
        %1065 = vmatmul.mubr.f32.gmra.mrb[0].mxu0 %v968
        %v1066 = vpop.f32.mrb[0].mxu0
        %v1067 = vadd.f32 0.0, %v1066
        %v1068 = vpop.f32.mrb[0].mxu0
        %1069 = vmatprep.mubr.f32.mxu0 0.0
        %1070 = vmatmul.mubr.f32.gmra.mrb[0].mxu0 %v971
        %v1071 = vpop.f32.mrb[0].mxu0
        %v1072 = vadd.f32 0.0, %v1071
        %v1073 = vpop.f32.mrb[0].mxu0
        %1074 = vmatprep.mubr.f32.mxu0 0.0
        %1075 = vmatmul.mubr.f32.gmra.mrb[0].mxu0 %v974
        %v1076 = vpop.f32.mrb[0].mxu0
        %v1077 = vadd.f32 0.0, %v1076
        %v1078 = vpop.f32.mrb[0].mxu0
        %1079 = vmatprep.mubr.f32.mxu0 0.0
        %1080 = vmatmul.mubr.f32.gmra.mrb[0].mxu0 %v977
        %v1081 = vpop.f32.mrb[0].mxu0
        %v1082 = vadd.f32 0.0, %v1081
        %v1083 = vpop.f32.mrb[0].mxu0
        %1084 = vmatprep.mubr.f32.mxu0 0.0
        %1085 = vmatmul.mubr.f32.gmra.mrb[0].mxu0 %v980
        %v1086 = vpop.f32.mrb[0].mxu0
        %v1087 = vadd.f32 0.0, %v1086
        %v1088 = vpop.f32.mrb[0].mxu0
        %1089 = vdwg.mxu0
        %v1090 = vadd.f32 %v909, %v1052
        %v1091 = vadd.f32 %v914, %v1057
        %v1092 = vadd.f32 %v919, %v1062
        %v1093 = vadd.f32 %v924, %v1067
        %v1094 = vadd.f32 %v929, %v1072
        %v1095 = vadd.f32 %v934, %v1077
        %v1096 = vadd.f32 %v939, %v1082
        %v1097 = vadd.f32 %v944, %v1087
        %v1098 = vld [vmem:[%s6] sm:$0x1]
        %v1100 = vlaneseq
        %v1101 = vshrl.u32 %v1100, 7
        %v1102 = vsub.s32 0, %v1101
        %v1103 = vrot.slane %v1098, %v1102
        %v1105 = vadd.f32 %v1090, %v1103
        %v1106 = vadd.f32 %v1091, %v1103
        %v1107 = vadd.f32 %v1092, %v1103
        %v1108 = vadd.f32 %v1093, %v1103
        %v1109 = vadd.f32 %v1094, %v1103
        %v1110 = vadd.f32 %v1095, %v1103
        %v1111 = vadd.f32 %v1096, %v1103
        %v1112 = vadd.f32 %v1097, %v1103
        %v1113 = vsel %vm474, %v1105, 0.0
        %v1114 = vsel %vm474, %v1106, 0.0
        %v1115 = vadd.f32 %v1113, %v1114
        %v1116 = vsel %vm474, %v1107, 0.0
        %v1117 = vadd.f32 %v1115, %v1116
        %v1118 = vsel %vm474, %v1108, 0.0
        %v1119 = vadd.f32 %v1117, %v1118
        %v1120 = vsel %vm474, %v1109, 0.0
        %v1121 = vadd.f32 %v1119, %v1120
        %v1122 = vsel %vm474, %v1110, 0.0
        %v1123 = vadd.f32 %v1121, %v1122
        %v1124 = vsel %vm474, %v1111, 0.0
        %v1125 = vadd.f32 %v1123, %v1124
        %v1126 = vsel %vm474, %v1112, 0.0
        %v1127 = vadd.f32 %v1125, %v1126
        %v1128 = vrot.slane %v1127, 4
        %v1129 = vadd.f32 %v1127, %v1128
        %v1130 = vrot.slane %v1129, 2
        %v1131 = vadd.f32 %v1129, %v1130
        %v1132 = vrot.slane %v1131, 1
        %v1133 = vadd.f32 %v1131, %v1132
        %v1134 = vmul.f32 %v1105, %v1105
        %v1135 = vmul.f32 %v1106, %v1106
        %v1136 = vmul.f32 %v1107, %v1107
        %v1137 = vmul.f32 %v1108, %v1108
        %v1138 = vmul.f32 %v1109, %v1109
        %v1139 = vmul.f32 %v1110, %v1110
        %v1140 = vmul.f32 %v1111, %v1111
        %v1141 = vmul.f32 %v1112, %v1112
        %v1142 = vsel %vm474, %v1134, 0.0
        %v1143 = vsel %vm474, %v1135, 0.0
        %v1144 = vadd.f32 %v1142, %v1143
        %v1145 = vsel %vm474, %v1136, 0.0
        %v1146 = vadd.f32 %v1144, %v1145
        %v1147 = vsel %vm474, %v1137, 0.0
        %v1148 = vadd.f32 %v1146, %v1147
        %v1149 = vsel %vm474, %v1138, 0.0
        %v1150 = vadd.f32 %v1148, %v1149
        %v1151 = vsel %vm474, %v1139, 0.0
        %v1152 = vadd.f32 %v1150, %v1151
        %v1153 = vsel %vm474, %v1140, 0.0
        %v1154 = vadd.f32 %v1152, %v1153
        %v1155 = vsel %vm474, %v1141, 0.0
        %v1156 = vadd.f32 %v1154, %v1155
        %v1157 = vrot.slane %v1156, 4
        %v1158 = vadd.f32 %v1156, %v1157
        %v1159 = vrot.slane %v1158, 2
        %v1160 = vadd.f32 %v1158, %v1159
        %v1161 = vrot.slane %v1160, 1
        %v1162 = vadd.f32 %v1160, %v1161
        %vm1163 = vcmask 1040384
        %v1164 = vsel %vm1163, %v1133, %v1162
        %p1165 = scmp.eq.s32.totalorder %s40, 0
        // Predicated region
        $region41: #{tpu_custom_call.1} parent=39 // pred_check
          %p1166 = pneg %p1165
        $region42: #{tpu_custom_call.1} parent=39 // pred_check_branch
          %1168 = sbr.rel (%p1166) target = $region44
        $region43: #{tpu_custom_call.1} parent=39 // pred_region
          %vm1169 = vcmask 25600
          %1170 = vst.msk [vmem:[%s401] sm:$0x3] %vm1169, %v1164
        $region44: #{tpu_custom_call.1} parent=39 // pred_fallthru
          _
        %p1171 = scmp.gt.s32.totalorder %s40, 0
        // Predicated region
        $region45: #{tpu_custom_call.1} parent=39 // pred_check
          %p1172 = pneg %p1171
        $region46: #{tpu_custom_call.1} parent=39 // pred_check_branch
          %1174 = sbr.rel (%p1172) target = $region48
        $region47: #{tpu_custom_call.1} parent=39 // pred_region
          %v1175 = vld [vmem:[%s401] sm:$0x3]
          %v1176 = vadd.f32 %v1175, %v1164
          %vm1177 = vcmask 25600
          %1178 = vst.msk [vmem:[%s401] sm:$0x3] %vm1177, %v1176
        $region48: #{tpu_custom_call.1} parent=39 // pred_fallthru
          _
        %1179 = vst.msk [vmem:[%s458] sm:$0xff] %vm474, %v1105
        %1180 = vst.msk [vmem:[%s458 + $0x8] sm:$0xff] %vm474, %v1106
        %1181 = vst.msk [vmem:[%s458 + $0x10] sm:$0xff] %vm474, %v1107
        %1182 = vst.msk [vmem:[%s458 + $0x18] sm:$0xff] %vm474, %v1108
        %1183 = vst.msk [vmem:[%s458 + $0x20] sm:$0xff] %vm474, %v1109
        %1184 = vst.msk [vmem:[%s458 + $0x28] sm:$0xff] %vm474, %v1110
        %1185 = vst.msk [vmem:[%s458 + $0x30] sm:$0xff] %vm474, %v1111
        %1186 = vst.msk [vmem:[%s458 + $0x38] sm:$0xff] %vm474, %v1112
        %s1187 = smul.u32 %s39, 2
        %s1188 = sadd.s32 %s1187, %s40
        %s1189 = smul.u32 4, %s1188
        %p1190 = scmp.lt.s32.totalorder %s38, 1
        %s1191 = scalar_select %p1190, %s38, 1
        %p1192 = scmp.lt.s32.totalorder %s1189, 15
        %s1193 = scalar_select %p1192, %s1189, 15
        %s1194 = smul.addr %s1193, 2
        %s1195 = smul.addr %s1191, 32
        %s1196 = sadd.s32 %s1194, %s1195
        %s1197 = smul.addr %s1196, 8
        %s1198 = scalar_lea.vmem %s7, %s1197
        %s1199 = sand.u32 %s236, 1
        %s1200 = scalar_lea.sflag [#allocation8], %s1199
        %s1201 = sand.u32 %s236, 1
        %s1202 = smul.addr %s1201, 2
        %s1203 = scalar_lea.vmem [#allocation7], %s1202
        // Predicated region
        $region49: #{tpu_custom_call.1} parent=39 // pred_check
          %p1204 = pneg %p218
        $region50: #{tpu_custom_call.1} parent=39 // pred_check_branch
          %1206 = sbr.rel (%p1204) target = $region52
        $region51: #{tpu_custom_call.1} parent=39 // pred_region
          %s1207 = smul.u32 %s39, 2
          %s1208 = sadd.s32 %s1207, %s40
          %s1209 = smul.u32 4, %s1208
        $region52: #{tpu_custom_call.1} parent=39 // pred_fallthru
          _
        // Predicated region
        $region53: #{tpu_custom_call.1} parent=39 // pred_check
          %p1210 = pneg %p246
        $region54: #{tpu_custom_call.1} parent=39 // pred_check_branch
          %1212 = sbr.rel (%p1210) target = $region56
        $region55: #{tpu_custom_call.1} parent=39 // pred_region
          %s1214 = ssub.s32 32, 32
          %1215 = vsyncadd %s1200, %s1214
          %s1216 = smul.addr %s38, 2
          %s1217 = sadd.s32 %s39, %s1216
          %s1218 = smul.addr %s1217, 32
          %s1219 = scalar_lea.hbm %s8, %s1218
          %s1221 = sshll.u32 %s1203, 4
          %s1222 = int_to_ptr.vmem [resolvable:$true] %s1221
          %1224 = dma.vmem_to_hbm [thread:$0]  %s1222, 32, %s1219, %s1200
        $region56: #{tpu_custom_call.1} parent=39 // pred_fallthru
          _
      $region40: #{tpu_custom_call.1} parent=5 // pred_fallthru
        _
      %p1225 = scmp.le.s32.totalorder 2, %s28
      // Predicated region
      $region57: #{tpu_custom_call.1} parent=5 // pred_check
        %p1226 = pneg %p1225
      $region58: #{tpu_custom_call.1} parent=5 // pred_check_branch
        %1228 = sbr.rel (%p1226) target = $region60
      $region59: #{tpu_custom_call.1} parent=5 // pred_region
        %s1229 = ssub.s32 %s28, 2
        // Predicated region
        $region61: #{tpu_custom_call.1} parent=59 // pred_check
          %p1230 = pneg %p224
        $region62: #{tpu_custom_call.1} parent=59 // pred_check_branch
          %1232 = sbr.rel (%p1230) target = $region64
        $region63: #{tpu_custom_call.1} parent=59 // pred_region
          %s1233 = smul.u32 %s42, 2
          %s1234 = sadd.s32 %s1233, %s43
          %s1235 = smul.u32 4, %s1234
          %p1236 = scmp.lt.s32.totalorder %s41, 1
          %s1237 = scalar_select %p1236, %s41, 1
          %p1238 = scmp.lt.s32.totalorder %s1235, 15
          %s1239 = scalar_select %p1238, %s1235, 15
          %s1240 = smul.addr %s1239, 2
          %s1241 = smul.addr %s1237, 32
          %s1242 = sadd.s32 %s1240, %s1241
          %s1243 = smul.addr %s1242, 8
          %s1244 = scalar_lea.vmem %s7, %s1243
        $region64: #{tpu_custom_call.1} parent=59 // pred_fallthru
          _
        // Predicated region
        $region65: #{tpu_custom_call.1} parent=59 // pred_check
          %p1245 = pneg %p252
        $region66: #{tpu_custom_call.1} parent=59 // pred_check_branch
          %1247 = sbr.rel (%p1245) target = $region68
        $region67: #{tpu_custom_call.1} parent=59 // pred_region
          %s1248 = sand.u32 %s237, 1
          %s1249 = scalar_lea.sflag [#allocation8], %s1248
          %s1250 = sand.u32 %s237, 1
          %s1251 = smul.addr %s1250, 2
          %s1252 = scalar_lea.vmem [#allocation7], %s1251
          %1253 = dma.done %s1249, 32
        $region68: #{tpu_custom_call.1} parent=59 // pred_fallthru
          _
      $region60: #{tpu_custom_call.1} parent=5 // pred_fallthru
        _
    $region6: #{tpu_custom_call.1} parent=1 // loop_footer
      %s32 = sadd.s32 1, %s28
    $region7: #{tpu_custom_call.1} parent=1 // loop_footer_branch
      %27 = sbr.rel target = $region3
    $region8: #{tpu_custom_call.1} parent=1 // loop_exit
      _
    %1254 = vsyncpa [#allocation8], 1
    %s1255 = scalar_lea.sflag [#allocation8], 1
    %1256 = vsyncpa %s1255, 1

</llo_original>
